<compile_context>
chip_gen: v7x
topology: tpu7x:2x2x1
jax: 0.10.0
libtpu: 0.0.40
codegen_flags: <defaults>
</compile_context>

<pallas_src>
import jax
import jax.numpy as jnp
from jax import lax
from jax.experimental import pallas as pl
from jax.experimental.pallas import tpu as pltpu  # noqa: F401  (TPU backend assumed)

B, S, H = 2, 8, 32          # batch, seq, hidden
NH = 4                      # num_attention_heads
HD = H // NH                # head_dim
INNER = 4 * H               # n_inner is None -> 4 * hidden_size
EPS = 1e-5                  # layer_norm_epsilon
MASKED_BIAS = -10000.0      # self.masked_bias
BS = B * S
BNH = B * NH


def _mm(a, b):
    # a @ b with f32 accumulation on the MXU.
    return lax.dot_general(a, b, (((1,), (0,)), ((), ())),
                           preferred_element_type=jnp.float32)


def _bmm(a, b, ca, cb):
    # Batched matmul over leading axis 0, contracting a[ca] with b[cb].
    return lax.dot_general(a, b, (((ca,), (cb,)), ((0,), (0,))),
                           preferred_element_type=jnp.float32)


def tfmr_block_kernel(h_ref,
                      ln1_g_ref, ln1_b_ref,
                      w_qkv_ref, b_qkv_ref,
                      w_aproj_ref, b_aproj_ref,
                      ln2_g_ref, ln2_b_ref,
                      w_fc_ref, b_fc_ref,
                      w_mproj_ref, b_mproj_ref,
                      out_ref, attn_w_ref):
    x = h_ref[...]                                           # (B*S, H)

    def layernorm(t, g, b):
        mu = jnp.mean(t, axis=-1, keepdims=True)
        var = jnp.mean((t - mu) ** 2, axis=-1, keepdims=True)  # biased var (PyTorch LN)
        return (t - mu) * lax.rsqrt(var + EPS) * g + b

    # ---- residual = hidden; hidden = ln_1(hidden); attention ----
    x_ln = layernorm(x, ln1_g_ref[0], ln1_b_ref[0])
    qkv = _mm(x_ln, w_qkv_ref[...]) + b_qkv_ref[0]           # c_attn -> (B*S, 3H)

    # Build head-batched (B*NH, S, HD) tensors without lane-dim reshapes:
    # only static leading/lane slices + concat along a new leading axis.
    def head_stack(base):
        return jnp.stack(
            [qkv[b * S:(b + 1) * S, base + h * HD: base + (h + 1) * HD]
             for b in range(B) for h in range(NH)], axis=0)

    q = head_stack(0)                                        # (B*NH, S, HD)
    k = head_stack(H)
    v = head_stack(2 * H)

    inv_scale = 1.0 / (float(HD) ** 0.5)                     # scale_attn_weights
    scores = _bmm(q, k, 2, 2) * inv_scale                    # (B*NH, S, S)

    # causal mask (same as the registered `bias` buffer sliced to [0:S, 0:S]).
    q_idx = lax.broadcasted_iota(jnp.int32, (S, S), 0)
    k_idx = lax.broadcasted_iota(jnp.int32, (S, S), 1)
    causal = (k_idx <= q_idx)[None, :, :]                    # (1, S, S)
    scores = jnp.where(causal, scores, MASKED_BIAS)

    scores = scores - jnp.max(scores, axis=-1, keepdims=True)
    p = jnp.exp(scores)
    attn = p * pl.reciprocal(jnp.sum(p, axis=-1, keepdims=True), approx=False)
    attn_w_ref[...] = attn                                   # one store, attn_dropout p=0

    ctx = _bmm(attn, v, 2, 1)                                # (B*NH, S, HD)

    # Fuse merge-heads into c_proj: out_b = sum_h ctx[b,h] @ W[h*HD:(h+1)*HD, :]
    w_ap = w_aproj_ref[...]
    w_heads = jnp.stack(
        [w_ap[h * HD:(h + 1) * HD, :] for _ in range(B) for h in range(NH)],
        axis=0)                                              # (B*NH, HD, H)
    proj_heads = _bmm(ctx, w_heads, 2, 1)                    # (B*NH, S, H)

    def merged_proj(b):
        acc = proj_heads[b * NH]
        for h in range(1, NH):
            acc = acc + proj_heads[b * NH + h]
        return acc                                           # (S, H)

    attn_out = jnp.concatenate([merged_proj(b) for b in range(B)], axis=0)  # (B*S, H)
    attn_out = attn_out + b_aproj_ref[0]                     # c_proj bias (resid_dropout p=0)

    h1 = x + attn_out                                        # residual add #1

    # ---- residual = hidden; hidden = ln_2(hidden); MLP ----
    x2 = layernorm(h1, ln2_g_ref[0], ln2_b_ref[0])
    ff = jnp.maximum(_mm(x2, w_fc_ref[...]) + b_fc_ref[0], 0.0)   # c_fc + relu
    ff = _mm(ff, w_mproj_ref[...]) + b_mproj_ref[0]               # c_proj (dropout p=0)

    out_ref[...] = h1 + ff                                   # residual add #2, one store


def tfmr_block(hidden, params):
    """Returns (hidden_states, attn_weights) exactly as TfmrBlock.forward with
    layer_past=None, use_cache=False."""
    # TODO(synk): layer_past / use_cache KV-cache concat path not implemented
    # (forward is called with layer_past=None, use_cache=False).
    x2d = hidden.reshape(BS, H)                              # fold batch into rows (JAX-side)

    matmul_flops = 2 * BS * H * (3 * H + H + 2 * INNER) + 4 * BNH * S * S * HD
    param_bytes = 4 * (H * 3 * H + 3 * H + H * H + H + 4 * H
                       + H * INNER + INNER + INNER * H + H)
    io_bytes = 4 * (2 * BS * H + BNH * S * S)
    cost = pl.CostEstimate(flops=matmul_flops,
                           transcendentals=BNH * S * S + 2 * BS,
                           bytes_accessed=param_bytes + io_bytes)

    out2d, attn = pl.pallas_call(
        tfmr_block_kernel,
        out_shape=(jax.ShapeDtypeStruct((BS, H), jnp.float32),
                   jax.ShapeDtypeStruct((BNH, S, S), jnp.float32)),
        cost_estimate=cost,
    )(x2d,
      params["ln1_g"], params["ln1_b"],
      params["w_qkv"], params["b_qkv"],
      params["w_aproj"], params["b_aproj"],
      params["ln2_g"], params["ln2_b"],
      params["w_fc"], params["b_fc"],
      params["w_mproj"], params["b_mproj"])
    return out2d.reshape(B, S, H), attn.reshape(B, NH, S, S)


def init_params(key):
    # Matches the PyTorch init: LayerNorm gamma=1/beta=0,
    # TransposeLinear weight ~ N(0, 0.02), bias = 0.
    ks = jax.random.split(key, 4)
    std = 0.02
    return dict(
        ln1_g=jnp.ones((1, H), jnp.float32),
        ln1_b=jnp.zeros((1, H), jnp.float32),
        w_qkv=std * jax.random.normal(ks[0], (H, 3 * H), jnp.float32),
        b_qkv=jnp.zeros((1, 3 * H), jnp.float32),
        w_aproj=std * jax.random.normal(ks[1], (H, H), jnp.float32),
        b_aproj=jnp.zeros((1, H), jnp.float32),
        ln2_g=jnp.ones((1, H), jnp.float32),
        ln2_b=jnp.zeros((1, H), jnp.float32),
        w_fc=std * jax.random.normal(ks[2], (H, INNER), jnp.float32),
        b_fc=jnp.zeros((1, INNER), jnp.float32),
        w_mproj=std * jax.random.normal(ks[3], (INNER, H), jnp.float32),
        b_mproj=jnp.zeros((1, H), jnp.float32),
    )


def reference(hidden, p):
    # Pure-JAX reference mirroring the PyTorch forward (correctness check).
    def ln(x, g, b):
        mu = x.mean(-1, keepdims=True)
        var = ((x - mu) ** 2).mean(-1, keepdims=True)
        return (x - mu) / jnp.sqrt(var + EPS) * g[0] + b[0]

    x = ln(hidden, p["ln1_g"], p["ln1_b"])
    qkv = x @ p["w_qkv"] + p["b_qkv"][0]
    q, k, v = jnp.split(qkv, 3, axis=-1)
    split = lambda t: t.reshape(B, S, NH, HD).transpose(0, 2, 1, 3)
    q, k, v = split(q), split(k), split(v)
    scores = jnp.einsum("bhqd,bhkd->bhqk", q, k) / (float(HD) ** 0.5)
    mask = jnp.tril(jnp.ones((S, S), bool))
    scores = jnp.where(mask, scores, MASKED_BIAS)
    attn = jax.nn.softmax(scores, axis=-1)
    ao = jnp.einsum("bhqk,bhkd->bhqd", attn, v)
    ao = ao.transpose(0, 2, 1, 3).reshape(B, S, H)
    ao = ao @ p["w_aproj"] + p["b_aproj"][0]
    h1 = hidden + ao
    x2 = ln(h1, p["ln2_g"], p["ln2_b"])
    ff = jax.nn.relu(x2 @ p["w_fc"] + p["b_fc"][0])
    ff = ff @ p["w_mproj"] + p["b_mproj"][0]
    return h1 + ff, attn


if __name__ == "__main__":
    key = jax.random.PRNGKey(0)
    k_x, k_p = jax.random.split(key)
    hidden = jax.random.normal(k_x, (B, S, H), jnp.float32)
    params = init_params(k_p)

    out, attn_w = tfmr_block(hidden, params)
    out = jax.block_until_ready(out)
    attn_w = jax.block_until_ready(attn_w)

    ref_out, ref_attn = reference(hidden, params)
    assert out.shape == (B, S, H) and attn_w.shape == (B, NH, S, S)
    assert jnp.allclose(out, ref_out, atol=1e-4, rtol=1e-4)
    assert jnp.allclose(attn_w, ref_attn, atol=1e-5, rtol=1e-5)

    print("KERNEL_OK")
</pallas_src>

<mosaic_0001>
module attributes {stable_mosaic.version = 11 : i64} {
  func.func @tfmr_block_kernel(%arg0: memref<16x32xf32, #tpu.memory_space<vmem>>, %arg1: memref<1x32xf32, #tpu.memory_space<vmem>>, %arg2: memref<1x32xf32, #tpu.memory_space<vmem>>, %arg3: memref<32x96xf32, #tpu.memory_space<vmem>>, %arg4: memref<1x96xf32, #tpu.memory_space<vmem>>, %arg5: memref<32x32xf32, #tpu.memory_space<vmem>>, %arg6: memref<1x32xf32, #tpu.memory_space<vmem>>, %arg7: memref<1x32xf32, #tpu.memory_space<vmem>>, %arg8: memref<1x32xf32, #tpu.memory_space<vmem>>, %arg9: memref<32x128xf32, #tpu.memory_space<vmem>>, %arg10: memref<1x128xf32, #tpu.memory_space<vmem>>, %arg11: memref<128x32xf32, #tpu.memory_space<vmem>>, %arg12: memref<1x32xf32, #tpu.memory_space<vmem>>, %arg13: memref<16x32xf32, #tpu.memory_space<vmem>>, %arg14: memref<8x8x8xf32, #tpu.memory_space<vmem>>) attributes {dimension_semantics = [], scalar_prefetch = 0 : i64, scratch_operands = 0 : i64, tpu.core_type = #tpu.core_type<tc>} {
    %c0 = arith.constant 0 : index
    %c0_0 = arith.constant 0 : index
    %0 = vector.load %arg0[%c0, %c0_0] : memref<16x32xf32, #tpu.memory_space<vmem>>, vector<16x32xf32>
    %c0_1 = arith.constant 0 : index
    %c0_2 = arith.constant 0 : index
    %1 = vector.load %arg1[%c0_1, %c0_2] : memref<1x32xf32, #tpu.memory_space<vmem>>, vector<1x32xf32>
    %2 = vector.shape_cast %1 : vector<1x32xf32> to vector<32xf32>
    %c0_3 = arith.constant 0 : index
    %c0_4 = arith.constant 0 : index
    %3 = vector.load %arg2[%c0_3, %c0_4] : memref<1x32xf32, #tpu.memory_space<vmem>>, vector<1x32xf32>
    %4 = vector.shape_cast %3 : vector<1x32xf32> to vector<32xf32>
    %cst = arith.constant dense<0.000000e+00> : vector<16xf32>
    %5 = vector.multi_reduction <add>, %0, %cst [1] : vector<16x32xf32> to vector<16xf32>
    %6 = vector.shape_cast %5 : vector<16xf32> to vector<16x1xf32>
    %cst_5 = arith.constant 3.200000e+01 : f32
    %7 = vector.broadcast %cst_5 : f32 to vector<16x1xf32>
    %8 = arith.divf %6, %7 : vector<16x1xf32>
    %9 = vector.broadcast %8 : vector<16x1xf32> to vector<16x32xf32>
    %10 = arith.subf %0, %9 : vector<16x32xf32>
    %11 = arith.mulf %10, %10 : vector<16x32xf32>
    %cst_6 = arith.constant dense<0.000000e+00> : vector<16xf32>
    %12 = vector.multi_reduction <add>, %11, %cst_6 [1] : vector<16x32xf32> to vector<16xf32>
    %13 = vector.shape_cast %12 : vector<16xf32> to vector<16x1xf32>
    %cst_7 = arith.constant 3.200000e+01 : f32
    %14 = vector.broadcast %cst_7 : f32 to vector<16x1xf32>
    %15 = arith.divf %13, %14 : vector<16x1xf32>
    %16 = vector.broadcast %8 : vector<16x1xf32> to vector<16x32xf32>
    %17 = arith.subf %0, %16 : vector<16x32xf32>
    %cst_8 = arith.constant 9.99999974E-6 : f32
    %18 = vector.broadcast %cst_8 : f32 to vector<16x1xf32>
    %19 = arith.addf %15, %18 : vector<16x1xf32>
    %20 = math.rsqrt %19 : vector<16x1xf32>
    %21 = vector.broadcast %20 : vector<16x1xf32> to vector<16x32xf32>
    %22 = arith.mulf %17, %21 : vector<16x32xf32>
    %23 = vector.shape_cast %2 : vector<32xf32> to vector<1x32xf32>
    %24 = vector.broadcast %23 : vector<1x32xf32> to vector<16x32xf32>
    %25 = arith.mulf %22, %24 : vector<16x32xf32>
    %26 = vector.shape_cast %4 : vector<32xf32> to vector<1x32xf32>
    %27 = vector.broadcast %26 : vector<1x32xf32> to vector<16x32xf32>
    %28 = arith.addf %25, %27 : vector<16x32xf32>
    %c0_9 = arith.constant 0 : index
    %c0_10 = arith.constant 0 : index
    %29 = vector.load %arg3[%c0_9, %c0_10] : memref<32x96xf32, #tpu.memory_space<vmem>>, vector<32x96xf32>
    %cst_11 = arith.constant dense<0.000000e+00> : vector<16x96xf32>
    %30 = tpu.matmul %28, %29, %cst_11 {dimension_numbers = #tpu.dot_dimension_numbers<[1], [0], [0], [1], [0, 0, 1, 1], [], []>} : vector<16x32xf32>, vector<32x96xf32>, vector<16x96xf32> -> vector<16x96xf32>
    %c0_12 = arith.constant 0 : index
    %c0_13 = arith.constant 0 : index
    %31 = vector.load %arg4[%c0_12, %c0_13] : memref<1x96xf32, #tpu.memory_space<vmem>>, vector<1x96xf32>
    %32 = vector.shape_cast %31 : vector<1x96xf32> to vector<96xf32>
    %33 = vector.shape_cast %32 : vector<96xf32> to vector<1x96xf32>
    %34 = vector.broadcast %33 : vector<1x96xf32> to vector<16x96xf32>
    %35 = arith.addf %30, %34 : vector<16x96xf32>
    %36 = vector.extract_strided_slice %35 {offsets = [0, 0], sizes = [8, 8], strides = [1, 1]} : vector<16x96xf32> to vector<8x8xf32>
    %37 = vector.extract_strided_slice %35 {offsets = [0, 8], sizes = [8, 8], strides = [1, 1]} : vector<16x96xf32> to vector<8x8xf32>
    %38 = vector.extract_strided_slice %35 {offsets = [0, 16], sizes = [8, 8], strides = [1, 1]} : vector<16x96xf32> to vector<8x8xf32>
    %39 = vector.extract_strided_slice %35 {offsets = [0, 24], sizes = [8, 8], strides = [1, 1]} : vector<16x96xf32> to vector<8x8xf32>
    %40 = vector.extract_strided_slice %35 {offsets = [8, 0], sizes = [8, 8], strides = [1, 1]} : vector<16x96xf32> to vector<8x8xf32>
    %41 = vector.extract_strided_slice %35 {offsets = [8, 8], sizes = [8, 8], strides = [1, 1]} : vector<16x96xf32> to vector<8x8xf32>
    %42 = vector.extract_strided_slice %35 {offsets = [8, 16], sizes = [8, 8], strides = [1, 1]} : vector<16x96xf32> to vector<8x8xf32>
    %43 = vector.extract_strided_slice %35 {offsets = [8, 24], sizes = [8, 8], strides = [1, 1]} : vector<16x96xf32> to vector<8x8xf32>
    %44 = vector.shape_cast %36 : vector<8x8xf32> to vector<1x8x8xf32>
    %45 = vector.shape_cast %37 : vector<8x8xf32> to vector<1x8x8xf32>
    %46 = vector.shape_cast %38 : vector<8x8xf32> to vector<1x8x8xf32>
    %47 = vector.shape_cast %39 : vector<8x8xf32> to vector<1x8x8xf32>
    %48 = vector.shape_cast %40 : vector<8x8xf32> to vector<1x8x8xf32>
    %49 = vector.shape_cast %41 : vector<8x8xf32> to vector<1x8x8xf32>
    %50 = vector.shape_cast %42 : vector<8x8xf32> to vector<1x8x8xf32>
    %51 = vector.shape_cast %43 : vector<8x8xf32> to vector<1x8x8xf32>
    %52 = tpu.concatenate %44, %45, %46, %47, %48, %49, %50, %51 in 0 : vector<1x8x8xf32>, vector<1x8x8xf32>, vector<1x8x8xf32>, vector<1x8x8xf32>, vector<1x8x8xf32>, vector<1x8x8xf32>, vector<1x8x8xf32>, vector<1x8x8xf32> -> vector<8x8x8xf32>
    %53 = vector.extract_strided_slice %35 {offsets = [0, 32], sizes = [8, 8], strides = [1, 1]} : vector<16x96xf32> to vector<8x8xf32>
    %54 = vector.extract_strided_slice %35 {offsets = [0, 40], sizes = [8, 8], strides = [1, 1]} : vector<16x96xf32> to vector<8x8xf32>
    %55 = vector.extract_strided_slice %35 {offsets = [0, 48], sizes = [8, 8], strides = [1, 1]} : vector<16x96xf32> to vector<8x8xf32>
    %56 = vector.extract_strided_slice %35 {offsets = [0, 56], sizes = [8, 8], strides = [1, 1]} : vector<16x96xf32> to vector<8x8xf32>
    %57 = vector.extract_strided_slice %35 {offsets = [8, 32], sizes = [8, 8], strides = [1, 1]} : vector<16x96xf32> to vector<8x8xf32>
    %58 = vector.extract_strided_slice %35 {offsets = [8, 40], sizes = [8, 8], strides = [1, 1]} : vector<16x96xf32> to vector<8x8xf32>
    %59 = vector.extract_strided_slice %35 {offsets = [8, 48], sizes = [8, 8], strides = [1, 1]} : vector<16x96xf32> to vector<8x8xf32>
    %60 = vector.extract_strided_slice %35 {offsets = [8, 56], sizes = [8, 8], strides = [1, 1]} : vector<16x96xf32> to vector<8x8xf32>
    %61 = vector.shape_cast %53 : vector<8x8xf32> to vector<1x8x8xf32>
    %62 = vector.shape_cast %54 : vector<8x8xf32> to vector<1x8x8xf32>
    %63 = vector.shape_cast %55 : vector<8x8xf32> to vector<1x8x8xf32>
    %64 = vector.shape_cast %56 : vector<8x8xf32> to vector<1x8x8xf32>
    %65 = vector.shape_cast %57 : vector<8x8xf32> to vector<1x8x8xf32>
    %66 = vector.shape_cast %58 : vector<8x8xf32> to vector<1x8x8xf32>
    %67 = vector.shape_cast %59 : vector<8x8xf32> to vector<1x8x8xf32>
    %68 = vector.shape_cast %60 : vector<8x8xf32> to vector<1x8x8xf32>
    %69 = tpu.concatenate %61, %62, %63, %64, %65, %66, %67, %68 in 0 : vector<1x8x8xf32>, vector<1x8x8xf32>, vector<1x8x8xf32>, vector<1x8x8xf32>, vector<1x8x8xf32>, vector<1x8x8xf32>, vector<1x8x8xf32>, vector<1x8x8xf32> -> vector<8x8x8xf32>
    %70 = vector.extract_strided_slice %35 {offsets = [0, 64], sizes = [8, 8], strides = [1, 1]} : vector<16x96xf32> to vector<8x8xf32>
    %71 = vector.extract_strided_slice %35 {offsets = [0, 72], sizes = [8, 8], strides = [1, 1]} : vector<16x96xf32> to vector<8x8xf32>
    %72 = vector.extract_strided_slice %35 {offsets = [0, 80], sizes = [8, 8], strides = [1, 1]} : vector<16x96xf32> to vector<8x8xf32>
    %73 = vector.extract_strided_slice %35 {offsets = [0, 88], sizes = [8, 8], strides = [1, 1]} : vector<16x96xf32> to vector<8x8xf32>
    %74 = vector.extract_strided_slice %35 {offsets = [8, 64], sizes = [8, 8], strides = [1, 1]} : vector<16x96xf32> to vector<8x8xf32>
    %75 = vector.extract_strided_slice %35 {offsets = [8, 72], sizes = [8, 8], strides = [1, 1]} : vector<16x96xf32> to vector<8x8xf32>
    %76 = vector.extract_strided_slice %35 {offsets = [8, 80], sizes = [8, 8], strides = [1, 1]} : vector<16x96xf32> to vector<8x8xf32>
    %77 = vector.extract_strided_slice %35 {offsets = [8, 88], sizes = [8, 8], strides = [1, 1]} : vector<16x96xf32> to vector<8x8xf32>
    %78 = vector.shape_cast %70 : vector<8x8xf32> to vector<1x8x8xf32>
    %79 = vector.shape_cast %71 : vector<8x8xf32> to vector<1x8x8xf32>
    %80 = vector.shape_cast %72 : vector<8x8xf32> to vector<1x8x8xf32>
    %81 = vector.shape_cast %73 : vector<8x8xf32> to vector<1x8x8xf32>
    %82 = vector.shape_cast %74 : vector<8x8xf32> to vector<1x8x8xf32>
    %83 = vector.shape_cast %75 : vector<8x8xf32> to vector<1x8x8xf32>
    %84 = vector.shape_cast %76 : vector<8x8xf32> to vector<1x8x8xf32>
    %85 = vector.shape_cast %77 : vector<8x8xf32> to vector<1x8x8xf32>
    %86 = tpu.concatenate %78, %79, %80, %81, %82, %83, %84, %85 in 0 : vector<1x8x8xf32>, vector<1x8x8xf32>, vector<1x8x8xf32>, vector<1x8x8xf32>, vector<1x8x8xf32>, vector<1x8x8xf32>, vector<1x8x8xf32>, vector<1x8x8xf32> -> vector<8x8x8xf32>
    %cst_14 = arith.constant dense<0.000000e+00> : vector<8x8x8xf32>
    %87 = tpu.matmul %52, %69, %cst_14 {dimension_numbers = #tpu.dot_dimension_numbers<[2], [2], [1], [1], [0, 0, 0, 1, 1, 1], [0], [0]>} : vector<8x8x8xf32>, vector<8x8x8xf32>, vector<8x8x8xf32> -> vector<8x8x8xf32>
    %cst_15 = arith.constant 0.353553385 : f32
    %88 = vector.broadcast %cst_15 : f32 to vector<8x8x8xf32>
    %89 = arith.mulf %87, %88 : vector<8x8x8xf32>
    %90 = tpu.iota {dimensions = array<i32: 0>} : vector<8x8xi32>
    %91 = tpu.iota {dimensions = array<i32: 1>} : vector<8x8xi32>
    %92 = arith.cmpi sle, %91, %90 : vector<8x8xi32>
    %93 = vector.shape_cast %92 : vector<8x8xi1> to vector<1x8x8xi1>
    %cst_16 = arith.constant -1.000000e+04 : f32
    %94 = vector.shape_cast %93 : vector<1x8x8xi1> to vector<1x8x8xi1>
    %95 = vector.broadcast %94 : vector<1x8x8xi1> to vector<8x8x8xi1>
    %96 = vector.broadcast %cst_16 : f32 to vector<8x8x8xf32>
    %97 = arith.select %95, %89, %96 : vector<8x8x8xi1>, vector<8x8x8xf32>
    %cst_17 = arith.constant dense<0xFF800000> : vector<8x8xf32>
    %98 = vector.multi_reduction <maximumf>, %97, %cst_17 [2] : vector<8x8x8xf32> to vector<8x8xf32>
    %99 = vector.shape_cast %98 : vector<8x8xf32> to vector<8x8x1xf32>
    %100 = vector.broadcast %99 : vector<8x8x1xf32> to vector<8x8x8xf32>
    %101 = arith.subf %97, %100 : vector<8x8x8xf32>
    %102 = math.exp %101 : vector<8x8x8xf32>
    %cst_18 = arith.constant dense<0.000000e+00> : vector<8x8xf32>
    %103 = vector.multi_reduction <add>, %102, %cst_18 [2] : vector<8x8x8xf32> to vector<8x8xf32>
    %104 = vector.shape_cast %103 : vector<8x8xf32> to vector<8x8x1xf32>
    %105 = tpu.reciprocal %104 : vector<8x8x1xf32> -> vector<8x8x1xf32>
    %106 = vector.broadcast %105 : vector<8x8x1xf32> to vector<8x8x8xf32>
    %107 = arith.mulf %102, %106 : vector<8x8x8xf32>
    %c0_19 = arith.constant 0 : index
    %c0_20 = arith.constant 0 : index
    %c0_21 = arith.constant 0 : index
    %108 = vector.load %arg14[%c0_19, %c0_20, %c0_21] : memref<8x8x8xf32, #tpu.memory_space<vmem>>, vector<8x8x8xf32>
    tpu.vector_store %arg14[%c0_19, %c0_20, %c0_21], %107 {strides = array<i32>} : memref<8x8x8xf32, #tpu.memory_space<vmem>>, vector<8x8x8xf32>,
    %cst_22 = arith.constant dense<0.000000e+00> : vector<8x8x8xf32>
    %109 = tpu.matmul %107, %86, %cst_22 {dimension_numbers = #tpu.dot_dimension_numbers<[2], [1], [1], [2], [0, 0, 0, 1, 1, 2], [0], [0]>} : vector<8x8x8xf32>, vector<8x8x8xf32>, vector<8x8x8xf32> -> vector<8x8x8xf32>
    %c0_23 = arith.constant 0 : index
    %c0_24 = arith.constant 0 : index
    %110 = vector.load %arg5[%c0_23, %c0_24] : memref<32x32xf32, #tpu.memory_space<vmem>>, vector<32x32xf32>
    %111 = vector.extract_strided_slice %110 {offsets = [0, 0], sizes = [8, 32], strides = [1, 1]} : vector<32x32xf32> to vector<8x32xf32>
    %112 = vector.extract_strided_slice %110 {offsets = [8, 0], sizes = [8, 32], strides = [1, 1]} : vector<32x32xf32> to vector<8x32xf32>
    %113 = vector.extract_strided_slice %110 {offsets = [16, 0], sizes = [8, 32], strides = [1, 1]} : vector<32x32xf32> to vector<8x32xf32>
    %114 = vector.extract_strided_slice %110 {offsets = [24, 0], sizes = [8, 32], strides = [1, 1]} : vector<32x32xf32> to vector<8x32xf32>
    %115 = vector.extract_strided_slice %110 {offsets = [0, 0], sizes = [8, 32], strides = [1, 1]} : vector<32x32xf32> to vector<8x32xf32>
    %116 = vector.extract_strided_slice %110 {offsets = [8, 0], sizes = [8, 32], strides = [1, 1]} : vector<32x32xf32> to vector<8x32xf32>
    %117 = vector.extract_strided_slice %110 {offsets = [16, 0], sizes = [8, 32], strides = [1, 1]} : vector<32x32xf32> to vector<8x32xf32>
    %118 = vector.extract_strided_slice %110 {offsets = [24, 0], sizes = [8, 32], strides = [1, 1]} : vector<32x32xf32> to vector<8x32xf32>
    %119 = vector.shape_cast %111 : vector<8x32xf32> to vector<1x8x32xf32>
    %120 = vector.shape_cast %112 : vector<8x32xf32> to vector<1x8x32xf32>
    %121 = vector.shape_cast %113 : vector<8x32xf32> to vector<1x8x32xf32>
    %122 = vector.shape_cast %114 : vector<8x32xf32> to vector<1x8x32xf32>
    %123 = vector.shape_cast %115 : vector<8x32xf32> to vector<1x8x32xf32>
    %124 = vector.shape_cast %116 : vector<8x32xf32> to vector<1x8x32xf32>
    %125 = vector.shape_cast %117 : vector<8x32xf32> to vector<1x8x32xf32>
    %126 = vector.shape_cast %118 : vector<8x32xf32> to vector<1x8x32xf32>
    %127 = tpu.concatenate %119, %120, %121, %122, %123, %124, %125, %126 in 0 : vector<1x8x32xf32>, vector<1x8x32xf32>, vector<1x8x32xf32>, vector<1x8x32xf32>, vector<1x8x32xf32>, vector<1x8x32xf32>, vector<1x8x32xf32>, vector<1x8x32xf32> -> vector<8x8x32xf32>
    %cst_25 = arith.constant dense<0.000000e+00> : vector<8x8x32xf32>
    %128 = tpu.matmul %109, %127, %cst_25 {dimension_numbers = #tpu.dot_dimension_numbers<[2], [1], [1], [2], [0, 0, 0, 1, 1, 2], [0], [0]>} : vector<8x8x8xf32>, vector<8x8x32xf32>, vector<8x8x32xf32> -> vector<8x8x32xf32>
    %129 = vector.extract_strided_slice %128 {offsets = [0, 0, 0], sizes = [1, 8, 32], strides = [1, 1, 1]} : vector<8x8x32xf32> to vector<1x8x32xf32>
    %130 = vector.shape_cast %129 : vector<1x8x32xf32> to vector<8x32xf32>
    %131 = vector.extract_strided_slice %128 {offsets = [1, 0, 0], sizes = [1, 8, 32], strides = [1, 1, 1]} : vector<8x8x32xf32> to vector<1x8x32xf32>
    %132 = vector.shape_cast %131 : vector<1x8x32xf32> to vector<8x32xf32>
    %133 = arith.addf %130, %132 : vector<8x32xf32>
    %134 = vector.extract_strided_slice %128 {offsets = [2, 0, 0], sizes = [1, 8, 32], strides = [1, 1, 1]} : vector<8x8x32xf32> to vector<1x8x32xf32>
    %135 = vector.shape_cast %134 : vector<1x8x32xf32> to vector<8x32xf32>
    %136 = arith.addf %133, %135 : vector<8x32xf32>
    %137 = vector.extract_strided_slice %128 {offsets = [3, 0, 0], sizes = [1, 8, 32], strides = [1, 1, 1]} : vector<8x8x32xf32> to vector<1x8x32xf32>
    %138 = vector.shape_cast %137 : vector<1x8x32xf32> to vector<8x32xf32>
    %139 = arith.addf %136, %138 : vector<8x32xf32>
    %140 = vector.extract_strided_slice %128 {offsets = [4, 0, 0], sizes = [1, 8, 32], strides = [1, 1, 1]} : vector<8x8x32xf32> to vector<1x8x32xf32>
    %141 = vector.shape_cast %140 : vector<1x8x32xf32> to vector<8x32xf32>
    %142 = vector.extract_strided_slice %128 {offsets = [5, 0, 0], sizes = [1, 8, 32], strides = [1, 1, 1]} : vector<8x8x32xf32> to vector<1x8x32xf32>
    %143 = vector.shape_cast %142 : vector<1x8x32xf32> to vector<8x32xf32>
    %144 = arith.addf %141, %143 : vector<8x32xf32>
    %145 = vector.extract_strided_slice %128 {offsets = [6, 0, 0], sizes = [1, 8, 32], strides = [1, 1, 1]} : vector<8x8x32xf32> to vector<1x8x32xf32>
    %146 = vector.shape_cast %145 : vector<1x8x32xf32> to vector<8x32xf32>
    %147 = arith.addf %144, %146 : vector<8x32xf32>
    %148 = vector.extract_strided_slice %128 {offsets = [7, 0, 0], sizes = [1, 8, 32], strides = [1, 1, 1]} : vector<8x8x32xf32> to vector<1x8x32xf32>
    %149 = vector.shape_cast %148 : vector<1x8x32xf32> to vector<8x32xf32>
    %150 = arith.addf %147, %149 : vector<8x32xf32>
    %151 = tpu.concatenate %139, %150 in 0 : vector<8x32xf32>, vector<8x32xf32> -> vector<16x32xf32>
    %c0_26 = arith.constant 0 : index
    %c0_27 = arith.constant 0 : index
    %152 = vector.load %arg6[%c0_26, %c0_27] : memref<1x32xf32, #tpu.memory_space<vmem>>, vector<1x32xf32>
    %153 = vector.shape_cast %152 : vector<1x32xf32> to vector<32xf32>
    %154 = vector.shape_cast %153 : vector<32xf32> to vector<1x32xf32>
    %155 = vector.broadcast %154 : vector<1x32xf32> to vector<16x32xf32>
    %156 = arith.addf %151, %155 : vector<16x32xf32>
    %157 = arith.addf %0, %156 : vector<16x32xf32>
    %c0_28 = arith.constant 0 : index
    %c0_29 = arith.constant 0 : index
    %158 = vector.load %arg7[%c0_28, %c0_29] : memref<1x32xf32, #tpu.memory_space<vmem>>, vector<1x32xf32>
    %159 = vector.shape_cast %158 : vector<1x32xf32> to vector<32xf32>
    %c0_30 = arith.constant 0 : index
    %c0_31 = arith.constant 0 : index
    %160 = vector.load %arg8[%c0_30, %c0_31] : memref<1x32xf32, #tpu.memory_space<vmem>>, vector<1x32xf32>
    %161 = vector.shape_cast %160 : vector<1x32xf32> to vector<32xf32>
    %cst_32 = arith.constant dense<0.000000e+00> : vector<16xf32>
    %162 = vector.multi_reduction <add>, %157, %cst_32 [1] : vector<16x32xf32> to vector<16xf32>
    %163 = vector.shape_cast %162 : vector<16xf32> to vector<16x1xf32>
    %cst_33 = arith.constant 3.200000e+01 : f32
    %164 = vector.broadcast %cst_33 : f32 to vector<16x1xf32>
    %165 = arith.divf %163, %164 : vector<16x1xf32>
    %166 = vector.broadcast %165 : vector<16x1xf32> to vector<16x32xf32>
    %167 = arith.subf %157, %166 : vector<16x32xf32>
    %168 = arith.mulf %167, %167 : vector<16x32xf32>
    %cst_34 = arith.constant dense<0.000000e+00> : vector<16xf32>
    %169 = vector.multi_reduction <add>, %168, %cst_34 [1] : vector<16x32xf32> to vector<16xf32>
    %170 = vector.shape_cast %169 : vector<16xf32> to vector<16x1xf32>
    %cst_35 = arith.constant 3.200000e+01 : f32
    %171 = vector.broadcast %cst_35 : f32 to vector<16x1xf32>
    %172 = arith.divf %170, %171 : vector<16x1xf32>
    %173 = vector.broadcast %165 : vector<16x1xf32> to vector<16x32xf32>
    %174 = arith.subf %157, %173 : vector<16x32xf32>
    %cst_36 = arith.constant 9.99999974E-6 : f32
    %175 = vector.broadcast %cst_36 : f32 to vector<16x1xf32>
    %176 = arith.addf %172, %175 : vector<16x1xf32>
    %177 = math.rsqrt %176 : vector<16x1xf32>
    %178 = vector.broadcast %177 : vector<16x1xf32> to vector<16x32xf32>
    %179 = arith.mulf %174, %178 : vector<16x32xf32>
    %180 = vector.shape_cast %159 : vector<32xf32> to vector<1x32xf32>
    %181 = vector.broadcast %180 : vector<1x32xf32> to vector<16x32xf32>
    %182 = arith.mulf %179, %181 : vector<16x32xf32>
    %183 = vector.shape_cast %161 : vector<32xf32> to vector<1x32xf32>
    %184 = vector.broadcast %183 : vector<1x32xf32> to vector<16x32xf32>
    %185 = arith.addf %182, %184 : vector<16x32xf32>
    %c0_37 = arith.constant 0 : index
    %c0_38 = arith.constant 0 : index
    %186 = vector.load %arg9[%c0_37, %c0_38] : memref<32x128xf32, #tpu.memory_space<vmem>>, vector<32x128xf32>
    %cst_39 = arith.constant dense<0.000000e+00> : vector<16x128xf32>
    %187 = tpu.matmul %185, %186, %cst_39 {dimension_numbers = #tpu.dot_dimension_numbers<[1], [0], [0], [1], [0, 0, 1, 1], [], []>} : vector<16x32xf32>, vector<32x128xf32>, vector<16x128xf32> -> vector<16x128xf32>
    %c0_40 = arith.constant 0 : index
    %c0_41 = arith.constant 0 : index
    %188 = vector.load %arg10[%c0_40, %c0_41] : memref<1x128xf32, #tpu.memory_space<vmem>>, vector<1x128xf32>
    %189 = vector.shape_cast %188 : vector<1x128xf32> to vector<128xf32>
    %190 = vector.shape_cast %189 : vector<128xf32> to vector<1x128xf32>
    %191 = vector.broadcast %190 : vector<1x128xf32> to vector<16x128xf32>
    %192 = arith.addf %187, %191 : vector<16x128xf32>
    %cst_42 = arith.constant 0.000000e+00 : f32
    %193 = vector.broadcast %cst_42 : f32 to vector<16x128xf32>
    %194 = arith.maximumf %192, %193 : vector<16x128xf32>
    %c0_43 = arith.constant 0 : index
    %c0_44 = arith.constant 0 : index
    %195 = vector.load %arg11[%c0_43, %c0_44] : memref<128x32xf32, #tpu.memory_space<vmem>>, vector<128x32xf32>
    %cst_45 = arith.constant dense<0.000000e+00> : vector<16x32xf32>
    %196 = tpu.matmul %194, %195, %cst_45 {dimension_numbers = #tpu.dot_dimension_numbers<[1], [0], [0], [1], [0, 0, 1, 1], [], []>} : vector<16x128xf32>, vector<128x32xf32>, vector<16x32xf32> -> vector<16x32xf32>
    %c0_46 = arith.constant 0 : index
    %c0_47 = arith.constant 0 : index
    %197 = vector.load %arg12[%c0_46, %c0_47] : memref<1x32xf32, #tpu.memory_space<vmem>>, vector<1x32xf32>
    %198 = vector.shape_cast %197 : vector<1x32xf32> to vector<32xf32>
    %199 = vector.shape_cast %198 : vector<32xf32> to vector<1x32xf32>
    %200 = vector.broadcast %199 : vector<1x32xf32> to vector<16x32xf32>
    %201 = arith.addf %196, %200 : vector<16x32xf32>
    %202 = arith.addf %157, %201 : vector<16x32xf32>
    %c0_48 = arith.constant 0 : index
    %c0_49 = arith.constant 0 : index
    %203 = vector.load %arg13[%c0_48, %c0_49] : memref<16x32xf32, #tpu.memory_space<vmem>>, vector<16x32xf32>
    tpu.vector_store %arg13[%c0_48, %c0_49], %202 {strides = array<i32>} : memref<16x32xf32, #tpu.memory_space<vmem>>, vector<16x32xf32>,
    return
  }
}

</mosaic_0001>

<llo_original>
// kernel: tpu_custom_call.1
$region0: #{tpu_custom_call.1}
  #allocation0 [shape = 'u32[]', space=smem, size = 0x4, offset = 0x4, fixed_abs, tag = 'smem constant byte address 0x4 - core index']
  #allocation1 [shape = 'u32[144,128]{1,0:T(1,128)}', space=vmem, size = 0x12000, scoped, tag = 'internal scratch']
  %s0 = inlined_call_operand.vmem [shape: f32[16,32], index: 0, kind: input, shape index: {}]
  %s1 = inlined_call_operand.vmem [shape: f32[1,32], index: 1, kind: input, shape index: {}]
  %s2 = inlined_call_operand.vmem [shape: f32[1,32], index: 2, kind: input, shape index: {}]
  %s3 = inlined_call_operand.vmem [shape: f32[32,96], index: 3, kind: input, shape index: {}]
  %s4 = inlined_call_operand.vmem [shape: f32[1,96], index: 4, kind: input, shape index: {}]
  %s5 = inlined_call_operand.vmem [shape: f32[32,32], index: 5, kind: input, shape index: {}]
  %s6 = inlined_call_operand.vmem [shape: f32[1,32], index: 6, kind: input, shape index: {}]
  %s7 = inlined_call_operand.vmem [shape: f32[1,32], index: 7, kind: input, shape index: {}]
  %s8 = inlined_call_operand.vmem [shape: f32[1,32], index: 8, kind: input, shape index: {}]
  %s9 = inlined_call_operand.vmem [shape: f32[32,128], index: 9, kind: input, shape index: {}]
  %s10 = inlined_call_operand.vmem [shape: f32[1,128], index: 10, kind: input, shape index: {}]
  %s11 = inlined_call_operand.vmem [shape: f32[128,32], index: 11, kind: input, shape index: {}]
  %s12 = inlined_call_operand.vmem [shape: f32[1,32], index: 12, kind: input, shape index: {}]
  %s13 = inlined_call_operand.hbm [shape: f32[16,32], index: 13, kind: output, shape index: {0}]
  %s14 = inlined_call_operand.hbm [shape: f32[8,8,8], index: 14, kind: output, shape index: {1}]
  %15 = xla_tuple %s13, %s14
  %s16 = sld [smem:[#allocation0]]
  $region70: #{tpu_custom_call.1} parent=0
    _
  %s18 = ssub.s32 1, %s16
  %s19 = scalar_select 0, %s18, %s16
  $region1: #{tpu_custom_call.1} parent=0
    #allocation2 [shape = 'u8[8192]{0}', space=vmem, size = 0x2000, scoped, tag = 'output window, operand 0, single buffered']
    #allocation3 [shape = 's32[1]{0}', space=sflag, size = 0x4, scoped, tag = 'scoped memory for tpu_custom_call.1']
    #allocation4 [shape = 'u8[32768]{0}', space=vmem, size = 0x8000, scoped, tag = 'output window, operand 1, single buffered']
    #allocation5 [shape = 's32[1]{0}', space=sflag, size = 0x4, scoped, tag = 'scoped memory for tpu_custom_call.1']
    %20 = vsyncpa [#allocation3], 0
    %21 = vsyncpa [#allocation5], 0
    // Predicated region
    $region2: #{tpu_custom_call.1} parent=1 // pred_check
      _
    $region3: #{tpu_custom_call.1} parent=1 // pred_check_branch
      %23 = sbr.rel (0) target = $region5
    $region4: #{tpu_custom_call.1} parent=1 // pred_region
      _
    $region5: #{tpu_custom_call.1} parent=1 // pred_fallthru
      _
    // Predicated region
    $region6: #{tpu_custom_call.1} parent=1 // pred_check
      _
    $region7: #{tpu_custom_call.1} parent=1 // pred_check_branch
      %25 = sbr.rel (0) target = $region9
    $region8: #{tpu_custom_call.1} parent=1 // pred_region
      _
    $region9: #{tpu_custom_call.1} parent=1 // pred_fallthru
      _
    // Predicated region
    $region10: #{tpu_custom_call.1} parent=1 // pred_check
      _
    $region11: #{tpu_custom_call.1} parent=1 // pred_check_branch
      %27 = sbr.rel (0) target = $region13
    $region12: #{tpu_custom_call.1} parent=1 // pred_region
      _
    $region13: #{tpu_custom_call.1} parent=1 // pred_fallthru
      _
    // Predicated region
    $region14: #{tpu_custom_call.1} parent=1 // pred_check
      _
    $region15: #{tpu_custom_call.1} parent=1 // pred_check_branch
      %29 = sbr.rel (0) target = $region17
    $region16: #{tpu_custom_call.1} parent=1 // pred_region
      _
    $region17: #{tpu_custom_call.1} parent=1 // pred_fallthru
      _
    // Predicated region
    $region18: #{tpu_custom_call.1} parent=1 // pred_check
      _
    $region19: #{tpu_custom_call.1} parent=1 // pred_check_branch
      %31 = sbr.rel (0) target = $region21
    $region20: #{tpu_custom_call.1} parent=1 // pred_region
      _
    $region21: #{tpu_custom_call.1} parent=1 // pred_fallthru
      _
    // Predicated region
    $region22: #{tpu_custom_call.1} parent=1 // pred_check
      _
    $region23: #{tpu_custom_call.1} parent=1 // pred_check_branch
      %33 = sbr.rel (0) target = $region25
    $region24: #{tpu_custom_call.1} parent=1 // pred_region
      _
    $region25: #{tpu_custom_call.1} parent=1 // pred_fallthru
      _
    // Predicated region
    $region26: #{tpu_custom_call.1} parent=1 // pred_check
      _
    $region27: #{tpu_custom_call.1} parent=1 // pred_check_branch
      %35 = sbr.rel (0) target = $region29
    $region28: #{tpu_custom_call.1} parent=1 // pred_region
      _
    $region29: #{tpu_custom_call.1} parent=1 // pred_fallthru
      _
    // Predicated region
    $region30: #{tpu_custom_call.1} parent=1 // pred_check
      _
    $region31: #{tpu_custom_call.1} parent=1 // pred_check_branch
      %37 = sbr.rel (0) target = $region33
    $region32: #{tpu_custom_call.1} parent=1 // pred_region
      _
    $region33: #{tpu_custom_call.1} parent=1 // pred_fallthru
      _
    // Predicated region
    $region34: #{tpu_custom_call.1} parent=1 // pred_check
      _
    $region35: #{tpu_custom_call.1} parent=1 // pred_check_branch
      %39 = sbr.rel (0) target = $region37
    $region36: #{tpu_custom_call.1} parent=1 // pred_region
      _
    $region37: #{tpu_custom_call.1} parent=1 // pred_fallthru
      _
    // Predicated region
    $region38: #{tpu_custom_call.1} parent=1 // pred_check
      _
    $region39: #{tpu_custom_call.1} parent=1 // pred_check_branch
      %41 = sbr.rel (0) target = $region41
    $region40: #{tpu_custom_call.1} parent=1 // pred_region
      _
    $region41: #{tpu_custom_call.1} parent=1 // pred_fallthru
      _
    // Predicated region
    $region42: #{tpu_custom_call.1} parent=1 // pred_check
      _
    $region43: #{tpu_custom_call.1} parent=1 // pred_check_branch
      %43 = sbr.rel (0) target = $region45
    $region44: #{tpu_custom_call.1} parent=1 // pred_region
      _
    $region45: #{tpu_custom_call.1} parent=1 // pred_fallthru
      _
    // Predicated region
    $region46: #{tpu_custom_call.1} parent=1 // pred_check
      _
    $region47: #{tpu_custom_call.1} parent=1 // pred_check_branch
      %45 = sbr.rel (0) target = $region49
    $region48: #{tpu_custom_call.1} parent=1 // pred_region
      _
    $region49: #{tpu_custom_call.1} parent=1 // pred_fallthru
      _
    // Predicated region
    $region50: #{tpu_custom_call.1} parent=1 // pred_check
      _
    $region51: #{tpu_custom_call.1} parent=1 // pred_check_branch
      %47 = sbr.rel (0) target = $region53
    $region52: #{tpu_custom_call.1} parent=1 // pred_region
      _
    $region53: #{tpu_custom_call.1} parent=1 // pred_fallthru
      _
    %v48 = vld [vmem:[%s0] sm:$0xff]
    %v49 = vld [vmem:[%s0 + $0x8] sm:$0xff]
    %v50 = vld [vmem:[%s1] sm:$0x1]
    %v51 = vld [vmem:[%s2] sm:$0x1]
    %vm52 = vcmask 261120
    %v53 = vsel %vm52, %v48, 0.0
    %54 = vadd.xlane.f32.xlu0 %v53
    %v55 = vpop.xlane.xlu0 %54
    %v56 = vsel %vm52, %v49, 0.0
    %57 = vadd.xlane.f32.xlu0 %v56
    %v58 = vpop.xlane.xlu0 %57
    %v59 = vrcp.pop 32.0
    %v60 = vmul.f32 %v55, %v59
    %v61 = vmul.f32 %v58, %v59
    %v62 = vsub.f32 %v48, %v60
    %v63 = vsub.f32 %v49, %v61
    %v64 = vmul.f32 %v62, %v62
    %v65 = vmul.f32 %v63, %v63
    %v66 = vsel %vm52, %v64, 0.0
    %67 = vadd.xlane.f32.xlu0 %v66
    %v68 = vpop.xlane.xlu0 %67
    %v69 = vsel %vm52, %v65, 0.0
    %70 = vadd.xlane.f32.xlu0 %v69
    %v71 = vpop.xlane.xlu0 %70
    %v72 = vmul.f32 %v68, %v59
    %v73 = vmul.f32 %v71, %v59
    %v74 = vadd.f32 %v72, 1e-05
    %v75 = vadd.f32 %v73, 1e-05
    %v76 = vrsqrt.pop %v74
    %v77 = vrsqrt.pop %v75
    %v78 = vmul.f32 %v62, %v76
    %v79 = vmul.f32 %v63, %v77
    %v81 = vlaneseq
    %v82 = vshrl.u32 %v81, 7
    %v83 = vsub.s32 0, %v82
    %v84 = vrot.slane %v50, %v83
    %v86 = vmul.f32 %v78, %v84
    %v87 = vmul.f32 %v79, %v84
    %v89 = vlaneseq
    %v90 = vshrl.u32 %v89, 7
    %v91 = vsub.s32 0, %v90
    %v92 = vrot.slane %v51, %v91
    %v94 = vadd.f32 %v86, %v92
    %v95 = vadd.f32 %v87, %v92
    %v96 = vld [vmem:[%s3] sm:$0xff]
    %v97 = vld [vmem:[%s3 + $0x8] sm:$0xff]
    %v98 = vld [vmem:[%s3 + $0x10] sm:$0xff]
    %v99 = vld [vmem:[%s3 + $0x18] sm:$0xff]
    %v100 = vld [vmem:[%s4] sm:$0x1]
    %v102 = vlaneseq
    %v103 = vshrl.u32 %v102, 7
    %v104 = vsub.s32 0, %v103
    %v105 = vrot.slane %v100, %v104
    %v108 = vsel %vm52, %v94, 0
    %v111 = vsel %vm52, %v95, 0
    %113 = vmatprep.subr.mxu0 0.0
    %114 = vmatpush1.msra.mxu0 %v96
    %115 = vmatprep.subr.mxu0 0.0
    %116 = vmatpush1.msra.mxu0 %v97
    %117 = vmatprep.subr.mxu0 0.0
    %118 = vmatpush1.msra.mxu0 %v98
    %119 = vmatprep.subr.mxu0 0.0
    %120 = vmatpush1.msra.mxu0 %v99
    %121 = vmatprep.subr.mxu0 0.0
    %122 = vmatpush1.msra.mxu0 0.0
    %123 = vmatprep.subr.mxu0 0.0
    %124 = vmatpush1.msra.mxu0 0.0
    %125 = vmatprep.subr.mxu0 0.0
    %126 = vmatpush1.msra.mxu0 0.0
    %127 = vmatprep.subr.mxu0 0.0
    %128 = vmatpush1.msra.mxu0 0.0
    %129 = vmatprep.subr.mxu0 0.0
    %130 = vmatpush1.msra.mxu0 0.0
    %131 = vmatprep.subr.mxu0 0.0
    %132 = vmatpush1.msra.mxu0 0.0
    %133 = vmatprep.subr.mxu0 0.0
    %134 = vmatpush1.msra.mxu0 0.0
    %135 = vmatprep.subr.mxu0 0.0
    %136 = vmatpush1.msra.mxu0 0.0
    %137 = vmatprep.subr.mxu0 0.0
    %138 = vmatpush1.msra.mxu0 0.0
    %139 = vmatprep.subr.mxu0 0.0
    %140 = vmatpush1.msra.mxu0 0.0
    %141 = vmatprep.subr.mxu0 0.0
    %142 = vmatpush1.msra.mxu0 0.0
    %143 = vmatprep.subr.mxu0 0.0
    %144 = vmatpush1.msra.mxu0 0.0
    %145 = vmatprep.subr.mxu0 0.0
    %146 = vmatpush1.msra.mxu0 0.0
    %147 = vmatprep.subr.mxu0 0.0
    %148 = vmatpush1.msra.mxu0 0.0
    %149 = vmatprep.subr.mxu0 0.0
    %150 = vmatpush1.msra.mxu0 0.0
    %151 = vmatprep.subr.mxu0 0.0
    %152 = vmatpush1.msra.mxu0 0.0
    %153 = vmatprep.subr.mxu0 0.0
    %154 = vmatpush1.msra.mxu0 0.0
    %155 = vmatprep.subr.mxu0 0.0
    %156 = vmatpush1.msra.mxu0 0.0
    %157 = vmatprep.subr.mxu0 0.0
    %158 = vmatpush1.msra.mxu0 0.0
    %159 = vmatprep.subr.mxu0 0.0
    %160 = vmatpush1.msra.mxu0 0.0
    %161 = vmatprep.subr.mxu0 0.0
    %162 = vmatpush1.msra.mxu0 0.0
    %163 = vmatprep.subr.mxu0 0.0
    %164 = vmatpush1.msra.mxu0 0.0
    %165 = vmatprep.subr.mxu0 0.0
    %166 = vmatpush1.msra.mxu0 0.0
    %167 = vmatprep.subr.mxu0 0.0
    %168 = vmatpush1.msra.mxu0 0.0
    %169 = vmatprep.subr.mxu0 0.0
    %170 = vmatpush1.msra.mxu0 0.0
    %171 = vmatprep.subr.mxu0 0.0
    %172 = vmatpush1.msra.mxu0 0.0
    %173 = vmatprep.subr.mxu0 0.0
    %174 = vmatpush1.msra.mxu0 0.0
    %175 = vmatprep.subr.mxu0 0.0
    %176 = vmatpush1.msra.mxu0 0.0
    %177 = vmatprep.mubr.f32.mxu0 0.0
    %178 = vmatmul.mubr.f32.gmra.mrb[0].mxu0 %v108
    %v179 = vpop.f32.mrb[0].mxu0
    %v180 = vadd.f32 %v105, %v179
    %v181 = vpop.f32.mrb[0].mxu0
    %182 = vmatprep.mubr.f32.mxu0 0.0
    %183 = vmatmul.mubr.f32.gmra.mrb[0].mxu0 %v111
    %v184 = vpop.f32.mrb[0].mxu0
    %v185 = vadd.f32 %v105, %v184
    %v186 = vpop.f32.mrb[0].mxu0
    %187 = vdwg.mxu0
    %189 = vrot.lane.b32.xlu0 %v180, 120
    %v190 = vpop.permute.xlu0 %189
    %191 = vrot.lane.b32.xlu0 %v180, 112
    %v192 = vpop.permute.xlu0 %191
    %193 = vrot.lane.b32.xlu0 %v180, 104
    %v194 = vpop.permute.xlu0 %193
    %196 = vrot.lane.b32.xlu0 %v185, 120
    %v197 = vpop.permute.xlu0 %196
    %198 = vrot.lane.b32.xlu0 %v185, 112
    %v199 = vpop.permute.xlu0 %198
    %200 = vrot.lane.b32.xlu0 %v185, 104
    %v201 = vpop.permute.xlu0 %200
    %202 = vrot.lane.b32.xlu0 %v180, 96
    %v203 = vpop.permute.xlu0 %202
    %vm204 = vcmask 64512
    %v205 = vsel %vm204, %v180, 0
    %v207 = vsel %vm204, %v203, 0
    %209 = vmatprep.subr.mxu0 0.0
    %210 = vmatpush1.xpose.msra.mxu0 %v207
    %211 = vmatprep.subr.mxu0 0.0
    %212 = vmatpush1.xpose.msra.mxu0 0.0
    %213 = vmatprep.subr.mxu0 0.0
    %214 = vmatpush1.xpose.msra.mxu0 0.0
    %215 = vmatprep.subr.mxu0 0.0
    %216 = vmatpush1.xpose.msra.mxu0 0.0
    %217 = vmatprep.subr.mxu0 0.0
    %218 = vmatpush1.xpose.msra.mxu0 0.0
    %219 = vmatprep.subr.mxu0 0.0
    %220 = vmatpush1.xpose.msra.mxu0 0.0
    %221 = vmatprep.subr.mxu0 0.0
    %222 = vmatpush1.xpose.msra.mxu0 0.0
    %223 = vmatprep.subr.mxu0 0.0
    %224 = vmatpush1.xpose.msra.mxu0 0.0
    %225 = vmatprep.subr.mxu0 0.0
    %226 = vmatpush1.xpose.msra.mxu0 0.0
    %227 = vmatprep.subr.mxu0 0.0
    %228 = vmatpush1.xpose.msra.mxu0 0.0
    %229 = vmatprep.subr.mxu0 0.0
    %230 = vmatpush1.xpose.msra.mxu0 0.0
    %231 = vmatprep.subr.mxu0 0.0
    %232 = vmatpush1.xpose.msra.mxu0 0.0
    %233 = vmatprep.subr.mxu0 0.0
    %234 = vmatpush1.xpose.msra.mxu0 0.0
    %235 = vmatprep.subr.mxu0 0.0
    %236 = vmatpush1.xpose.msra.mxu0 0.0
    %237 = vmatprep.subr.mxu0 0.0
    %238 = vmatpush1.xpose.msra.mxu0 0.0
    %239 = vmatprep.subr.mxu0 0.0
    %240 = vmatpush1.xpose.msra.mxu0 0.0
    %241 = vmatprep.subr.mxu0 0.0
    %242 = vmatpush1.xpose.msra.mxu0 0.0
    %243 = vmatprep.subr.mxu0 0.0
    %244 = vmatpush1.xpose.msra.mxu0 0.0
    %245 = vmatprep.subr.mxu0 0.0
    %246 = vmatpush1.xpose.msra.mxu0 0.0
    %247 = vmatprep.subr.mxu0 0.0
    %248 = vmatpush1.xpose.msra.mxu0 0.0
    %249 = vmatprep.subr.mxu0 0.0
    %250 = vmatpush1.xpose.msra.mxu0 0.0
    %251 = vmatprep.subr.mxu0 0.0
    %252 = vmatpush1.xpose.msra.mxu0 0.0
    %253 = vmatprep.subr.mxu0 0.0
    %254 = vmatpush1.xpose.msra.mxu0 0.0
    %255 = vmatprep.subr.mxu0 0.0
    %256 = vmatpush1.xpose.msra.mxu0 0.0
    %257 = vmatprep.subr.mxu0 0.0
    %258 = vmatpush1.xpose.msra.mxu0 0.0
    %259 = vmatprep.subr.mxu0 0.0
    %260 = vmatpush1.xpose.msra.mxu0 0.0
    %261 = vmatprep.subr.mxu0 0.0
    %262 = vmatpush1.xpose.msra.mxu0 0.0
    %263 = vmatprep.subr.mxu0 0.0
    %264 = vmatpush1.xpose.msra.mxu0 0.0
    %265 = vmatprep.subr.mxu0 0.0
    %266 = vmatpush1.xpose.msra.mxu0 0.0
    %267 = vmatprep.subr.mxu0 0.0
    %268 = vmatpush1.xpose.msra.mxu0 0.0
    %269 = vmatprep.subr.mxu0 0.0
    %270 = vmatpush1.xpose.msra.mxu0 0.0
    %271 = vmatprep.subr.mxu0 0.0
    %272 = vmatpush1.xpose.msra.mxu0 0.0
    %273 = vmatprep.mubr.f32.mxu0 0.0
    %274 = vmatmul.mubr.f32.gmra.mrb[0].mxu0 %v205
    %v275 = vpop.f32.mrb[0].mxu0
    %v276 = vadd.f32 0.0, %v275
    %v277 = vpop.f32.mrb[0].mxu0
    %278 = vdwg.mxu0
    %279 = vrot.lane.b32.xlu0 %v190, 96
    %v280 = vpop.permute.xlu0 %279
    %v281 = vsel %vm204, %v190, 0
    %v283 = vsel %vm204, %v280, 0
    %285 = vmatprep.subr.mxu0 0.0
    %286 = vmatpush1.xpose.msra.mxu0 %v283
    %287 = vmatprep.subr.mxu0 0.0
    %288 = vmatpush1.xpose.msra.mxu0 0.0
    %289 = vmatprep.subr.mxu0 0.0
    %290 = vmatpush1.xpose.msra.mxu0 0.0
    %291 = vmatprep.subr.mxu0 0.0
    %292 = vmatpush1.xpose.msra.mxu0 0.0
    %293 = vmatprep.subr.mxu0 0.0
    %294 = vmatpush1.xpose.msra.mxu0 0.0
    %295 = vmatprep.subr.mxu0 0.0
    %296 = vmatpush1.xpose.msra.mxu0 0.0
    %297 = vmatprep.subr.mxu0 0.0
    %298 = vmatpush1.xpose.msra.mxu0 0.0
    %299 = vmatprep.subr.mxu0 0.0
    %300 = vmatpush1.xpose.msra.mxu0 0.0
    %301 = vmatprep.subr.mxu0 0.0
    %302 = vmatpush1.xpose.msra.mxu0 0.0
    %303 = vmatprep.subr.mxu0 0.0
    %304 = vmatpush1.xpose.msra.mxu0 0.0
    %305 = vmatprep.subr.mxu0 0.0
    %306 = vmatpush1.xpose.msra.mxu0 0.0
    %307 = vmatprep.subr.mxu0 0.0
    %308 = vmatpush1.xpose.msra.mxu0 0.0
    %309 = vmatprep.subr.mxu0 0.0
    %310 = vmatpush1.xpose.msra.mxu0 0.0
    %311 = vmatprep.subr.mxu0 0.0
    %312 = vmatpush1.xpose.msra.mxu0 0.0
    %313 = vmatprep.subr.mxu0 0.0
    %314 = vmatpush1.xpose.msra.mxu0 0.0
    %315 = vmatprep.subr.mxu0 0.0
    %316 = vmatpush1.xpose.msra.mxu0 0.0
    %317 = vmatprep.subr.mxu0 0.0
    %318 = vmatpush1.xpose.msra.mxu0 0.0
    %319 = vmatprep.subr.mxu0 0.0
    %320 = vmatpush1.xpose.msra.mxu0 0.0
    %321 = vmatprep.subr.mxu0 0.0
    %322 = vmatpush1.xpose.msra.mxu0 0.0
    %323 = vmatprep.subr.mxu0 0.0
    %324 = vmatpush1.xpose.msra.mxu0 0.0
    %325 = vmatprep.subr.mxu0 0.0
    %326 = vmatpush1.xpose.msra.mxu0 0.0
    %327 = vmatprep.subr.mxu0 0.0
    %328 = vmatpush1.xpose.msra.mxu0 0.0
    %329 = vmatprep.subr.mxu0 0.0
    %330 = vmatpush1.xpose.msra.mxu0 0.0
    %331 = vmatprep.subr.mxu0 0.0
    %332 = vmatpush1.xpose.msra.mxu0 0.0
    %333 = vmatprep.subr.mxu0 0.0
    %334 = vmatpush1.xpose.msra.mxu0 0.0
    %335 = vmatprep.subr.mxu0 0.0
    %336 = vmatpush1.xpose.msra.mxu0 0.0
    %337 = vmatprep.subr.mxu0 0.0
    %338 = vmatpush1.xpose.msra.mxu0 0.0
    %339 = vmatprep.subr.mxu0 0.0
    %340 = vmatpush1.xpose.msra.mxu0 0.0
    %341 = vmatprep.subr.mxu0 0.0
    %342 = vmatpush1.xpose.msra.mxu0 0.0
    %343 = vmatprep.subr.mxu0 0.0
    %344 = vmatpush1.xpose.msra.mxu0 0.0
    %345 = vmatprep.subr.mxu0 0.0
    %346 = vmatpush1.xpose.msra.mxu0 0.0
    %347 = vmatprep.subr.mxu0 0.0
    %348 = vmatpush1.xpose.msra.mxu0 0.0
    %349 = vmatprep.mubr.f32.mxu0 0.0
    %350 = vmatmul.mubr.f32.gmra.mrb[0].mxu0 %v281
    %v351 = vpop.f32.mrb[0].mxu0
    %v352 = vadd.f32 0.0, %v351
    %v353 = vpop.f32.mrb[0].mxu0
    %354 = vdwg.mxu0
    %355 = vrot.lane.b32.xlu0 %v192, 96
    %v356 = vpop.permute.xlu0 %355
    %v357 = vsel %vm204, %v192, 0
    %v359 = vsel %vm204, %v356, 0
    %361 = vmatprep.subr.mxu0 0.0
    %362 = vmatpush1.xpose.msra.mxu0 %v359
    %363 = vmatprep.subr.mxu0 0.0
    %364 = vmatpush1.xpose.msra.mxu0 0.0
    %365 = vmatprep.subr.mxu0 0.0
    %366 = vmatpush1.xpose.msra.mxu0 0.0
    %367 = vmatprep.subr.mxu0 0.0
    %368 = vmatpush1.xpose.msra.mxu0 0.0
    %369 = vmatprep.subr.mxu0 0.0
    %370 = vmatpush1.xpose.msra.mxu0 0.0
    %371 = vmatprep.subr.mxu0 0.0
    %372 = vmatpush1.xpose.msra.mxu0 0.0
    %373 = vmatprep.subr.mxu0 0.0
    %374 = vmatpush1.xpose.msra.mxu0 0.0
    %375 = vmatprep.subr.mxu0 0.0
    %376 = vmatpush1.xpose.msra.mxu0 0.0
    %377 = vmatprep.subr.mxu0 0.0
    %378 = vmatpush1.xpose.msra.mxu0 0.0
    %379 = vmatprep.subr.mxu0 0.0
    %380 = vmatpush1.xpose.msra.mxu0 0.0
    %381 = vmatprep.subr.mxu0 0.0
    %382 = vmatpush1.xpose.msra.mxu0 0.0
    %383 = vmatprep.subr.mxu0 0.0
    %384 = vmatpush1.xpose.msra.mxu0 0.0
    %385 = vmatprep.subr.mxu0 0.0
    %386 = vmatpush1.xpose.msra.mxu0 0.0
    %387 = vmatprep.subr.mxu0 0.0
    %388 = vmatpush1.xpose.msra.mxu0 0.0
    %389 = vmatprep.subr.mxu0 0.0
    %390 = vmatpush1.xpose.msra.mxu0 0.0
    %391 = vmatprep.subr.mxu0 0.0
    %392 = vmatpush1.xpose.msra.mxu0 0.0
    %393 = vmatprep.subr.mxu0 0.0
    %394 = vmatpush1.xpose.msra.mxu0 0.0
    %395 = vmatprep.subr.mxu0 0.0
    %396 = vmatpush1.xpose.msra.mxu0 0.0
    %397 = vmatprep.subr.mxu0 0.0
    %398 = vmatpush1.xpose.msra.mxu0 0.0
    %399 = vmatprep.subr.mxu0 0.0
    %400 = vmatpush1.xpose.msra.mxu0 0.0
    %401 = vmatprep.subr.mxu0 0.0
    %402 = vmatpush1.xpose.msra.mxu0 0.0
    %403 = vmatprep.subr.mxu0 0.0
    %404 = vmatpush1.xpose.msra.mxu0 0.0
    %405 = vmatprep.subr.mxu0 0.0
    %406 = vmatpush1.xpose.msra.mxu0 0.0
    %407 = vmatprep.subr.mxu0 0.0
    %408 = vmatpush1.xpose.msra.mxu0 0.0
    %409 = vmatprep.subr.mxu0 0.0
    %410 = vmatpush1.xpose.msra.mxu0 0.0
    %411 = vmatprep.subr.mxu0 0.0
    %412 = vmatpush1.xpose.msra.mxu0 0.0
    %413 = vmatprep.subr.mxu0 0.0
    %414 = vmatpush1.xpose.msra.mxu0 0.0
    %415 = vmatprep.subr.mxu0 0.0
    %416 = vmatpush1.xpose.msra.mxu0 0.0
    %417 = vmatprep.subr.mxu0 0.0
    %418 = vmatpush1.xpose.msra.mxu0 0.0
    %419 = vmatprep.subr.mxu0 0.0
    %420 = vmatpush1.xpose.msra.mxu0 0.0
    %421 = vmatprep.subr.mxu0 0.0
    %422 = vmatpush1.xpose.msra.mxu0 0.0
    %423 = vmatprep.subr.mxu0 0.0
    %424 = vmatpush1.xpose.msra.mxu0 0.0
    %425 = vmatprep.mubr.f32.mxu0 0.0
    %426 = vmatmul.mubr.f32.gmra.mrb[0].mxu0 %v357
    %v427 = vpop.f32.mrb[0].mxu0
    %v428 = vadd.f32 0.0, %v427
    %v429 = vpop.f32.mrb[0].mxu0
    %430 = vdwg.mxu0
    %431 = vrot.lane.b32.xlu0 %v194, 96
    %v432 = vpop.permute.xlu0 %431
    %v433 = vsel %vm204, %v194, 0
    %v435 = vsel %vm204, %v432, 0
    %437 = vmatprep.subr.mxu0 0.0
    %438 = vmatpush1.xpose.msra.mxu0 %v435
    %439 = vmatprep.subr.mxu0 0.0
    %440 = vmatpush1.xpose.msra.mxu0 0.0
    %441 = vmatprep.subr.mxu0 0.0
    %442 = vmatpush1.xpose.msra.mxu0 0.0
    %443 = vmatprep.subr.mxu0 0.0
    %444 = vmatpush1.xpose.msra.mxu0 0.0
    %445 = vmatprep.subr.mxu0 0.0
    %446 = vmatpush1.xpose.msra.mxu0 0.0
    %447 = vmatprep.subr.mxu0 0.0
    %448 = vmatpush1.xpose.msra.mxu0 0.0
    %449 = vmatprep.subr.mxu0 0.0
    %450 = vmatpush1.xpose.msra.mxu0 0.0
    %451 = vmatprep.subr.mxu0 0.0
    %452 = vmatpush1.xpose.msra.mxu0 0.0
    %453 = vmatprep.subr.mxu0 0.0
    %454 = vmatpush1.xpose.msra.mxu0 0.0
    %455 = vmatprep.subr.mxu0 0.0
    %456 = vmatpush1.xpose.msra.mxu0 0.0
    %457 = vmatprep.subr.mxu0 0.0
    %458 = vmatpush1.xpose.msra.mxu0 0.0
    %459 = vmatprep.subr.mxu0 0.0
    %460 = vmatpush1.xpose.msra.mxu0 0.0
    %461 = vmatprep.subr.mxu0 0.0
    %462 = vmatpush1.xpose.msra.mxu0 0.0
    %463 = vmatprep.subr.mxu0 0.0
    %464 = vmatpush1.xpose.msra.mxu0 0.0
    %465 = vmatprep.subr.mxu0 0.0
    %466 = vmatpush1.xpose.msra.mxu0 0.0
    %467 = vmatprep.subr.mxu0 0.0
    %468 = vmatpush1.xpose.msra.mxu0 0.0
    %469 = vmatprep.subr.mxu0 0.0
    %470 = vmatpush1.xpose.msra.mxu0 0.0
    %471 = vmatprep.subr.mxu0 0.0
    %472 = vmatpush1.xpose.msra.mxu0 0.0
    %473 = vmatprep.subr.mxu0 0.0
    %474 = vmatpush1.xpose.msra.mxu0 0.0
    %475 = vmatprep.subr.mxu0 0.0
    %476 = vmatpush1.xpose.msra.mxu0 0.0
    %477 = vmatprep.subr.mxu0 0.0
    %478 = vmatpush1.xpose.msra.mxu0 0.0
    %479 = vmatprep.subr.mxu0 0.0
    %480 = vmatpush1.xpose.msra.mxu0 0.0
    %481 = vmatprep.subr.mxu0 0.0
    %482 = vmatpush1.xpose.msra.mxu0 0.0
    %483 = vmatprep.subr.mxu0 0.0
    %484 = vmatpush1.xpose.msra.mxu0 0.0
    %485 = vmatprep.subr.mxu0 0.0
    %486 = vmatpush1.xpose.msra.mxu0 0.0
    %487 = vmatprep.subr.mxu0 0.0
    %488 = vmatpush1.xpose.msra.mxu0 0.0
    %489 = vmatprep.subr.mxu0 0.0
    %490 = vmatpush1.xpose.msra.mxu0 0.0
    %491 = vmatprep.subr.mxu0 0.0
    %492 = vmatpush1.xpose.msra.mxu0 0.0
    %493 = vmatprep.subr.mxu0 0.0
    %494 = vmatpush1.xpose.msra.mxu0 0.0
    %495 = vmatprep.subr.mxu0 0.0
    %496 = vmatpush1.xpose.msra.mxu0 0.0
    %497 = vmatprep.subr.mxu0 0.0
    %498 = vmatpush1.xpose.msra.mxu0 0.0
    %499 = vmatprep.subr.mxu0 0.0
    %500 = vmatpush1.xpose.msra.mxu0 0.0
    %501 = vmatprep.mubr.f32.mxu0 0.0
    %502 = vmatmul.mubr.f32.gmra.mrb[0].mxu0 %v433
    %v503 = vpop.f32.mrb[0].mxu0
    %v504 = vadd.f32 0.0, %v503
    %v505 = vpop.f32.mrb[0].mxu0
    %506 = vdwg.mxu0
    %507 = vrot.lane.b32.xlu0 %v185, 96
    %v508 = vpop.permute.xlu0 %507
    %v509 = vsel %vm204, %v185, 0
    %v511 = vsel %vm204, %v508, 0
    %513 = vmatprep.subr.mxu0 0.0
    %514 = vmatpush1.xpose.msra.mxu0 %v511
    %515 = vmatprep.subr.mxu0 0.0
    %516 = vmatpush1.xpose.msra.mxu0 0.0
    %517 = vmatprep.subr.mxu0 0.0
    %518 = vmatpush1.xpose.msra.mxu0 0.0
    %519 = vmatprep.subr.mxu0 0.0
    %520 = vmatpush1.xpose.msra.mxu0 0.0
    %521 = vmatprep.subr.mxu0 0.0
    %522 = vmatpush1.xpose.msra.mxu0 0.0
    %523 = vmatprep.subr.mxu0 0.0
    %524 = vmatpush1.xpose.msra.mxu0 0.0
    %525 = vmatprep.subr.mxu0 0.0
    %526 = vmatpush1.xpose.msra.mxu0 0.0
    %527 = vmatprep.subr.mxu0 0.0
    %528 = vmatpush1.xpose.msra.mxu0 0.0
    %529 = vmatprep.subr.mxu0 0.0
    %530 = vmatpush1.xpose.msra.mxu0 0.0
    %531 = vmatprep.subr.mxu0 0.0
    %532 = vmatpush1.xpose.msra.mxu0 0.0
    %533 = vmatprep.subr.mxu0 0.0
    %534 = vmatpush1.xpose.msra.mxu0 0.0
    %535 = vmatprep.subr.mxu0 0.0
    %536 = vmatpush1.xpose.msra.mxu0 0.0
    %537 = vmatprep.subr.mxu0 0.0
    %538 = vmatpush1.xpose.msra.mxu0 0.0
    %539 = vmatprep.subr.mxu0 0.0
    %540 = vmatpush1.xpose.msra.mxu0 0.0
    %541 = vmatprep.subr.mxu0 0.0
    %542 = vmatpush1.xpose.msra.mxu0 0.0
    %543 = vmatprep.subr.mxu0 0.0
    %544 = vmatpush1.xpose.msra.mxu0 0.0
    %545 = vmatprep.subr.mxu0 0.0
    %546 = vmatpush1.xpose.msra.mxu0 0.0
    %547 = vmatprep.subr.mxu0 0.0
    %548 = vmatpush1.xpose.msra.mxu0 0.0
    %549 = vmatprep.subr.mxu0 0.0
    %550 = vmatpush1.xpose.msra.mxu0 0.0
    %551 = vmatprep.subr.mxu0 0.0
    %552 = vmatpush1.xpose.msra.mxu0 0.0
    %553 = vmatprep.subr.mxu0 0.0
    %554 = vmatpush1.xpose.msra.mxu0 0.0
    %555 = vmatprep.subr.mxu0 0.0
    %556 = vmatpush1.xpose.msra.mxu0 0.0
    %557 = vmatprep.subr.mxu0 0.0
    %558 = vmatpush1.xpose.msra.mxu0 0.0
    %559 = vmatprep.subr.mxu0 0.0
    %560 = vmatpush1.xpose.msra.mxu0 0.0
    %561 = vmatprep.subr.mxu0 0.0
    %562 = vmatpush1.xpose.msra.mxu0 0.0
    %563 = vmatprep.subr.mxu0 0.0
    %564 = vmatpush1.xpose.msra.mxu0 0.0
    %565 = vmatprep.subr.mxu0 0.0
    %566 = vmatpush1.xpose.msra.mxu0 0.0
    %567 = vmatprep.subr.mxu0 0.0
    %568 = vmatpush1.xpose.msra.mxu0 0.0
    %569 = vmatprep.subr.mxu0 0.0
    %570 = vmatpush1.xpose.msra.mxu0 0.0
    %571 = vmatprep.subr.mxu0 0.0
    %572 = vmatpush1.xpose.msra.mxu0 0.0
    %573 = vmatprep.subr.mxu0 0.0
    %574 = vmatpush1.xpose.msra.mxu0 0.0
    %575 = vmatprep.subr.mxu0 0.0
    %576 = vmatpush1.xpose.msra.mxu0 0.0
    %577 = vmatprep.mubr.f32.mxu0 0.0
    %578 = vmatmul.mubr.f32.gmra.mrb[0].mxu0 %v509
    %v579 = vpop.f32.mrb[0].mxu0
    %v580 = vadd.f32 0.0, %v579
    %v581 = vpop.f32.mrb[0].mxu0
    %582 = vdwg.mxu0
    %583 = vrot.lane.b32.xlu0 %v197, 96
    %v584 = vpop.permute.xlu0 %583
    %v585 = vsel %vm204, %v197, 0
    %v587 = vsel %vm204, %v584, 0
    %589 = vmatprep.subr.mxu0 0.0
    %590 = vmatpush1.xpose.msra.mxu0 %v587
    %591 = vmatprep.subr.mxu0 0.0
    %592 = vmatpush1.xpose.msra.mxu0 0.0
    %593 = vmatprep.subr.mxu0 0.0
    %594 = vmatpush1.xpose.msra.mxu0 0.0
    %595 = vmatprep.subr.mxu0 0.0
    %596 = vmatpush1.xpose.msra.mxu0 0.0
    %597 = vmatprep.subr.mxu0 0.0
    %598 = vmatpush1.xpose.msra.mxu0 0.0
    %599 = vmatprep.subr.mxu0 0.0
    %600 = vmatpush1.xpose.msra.mxu0 0.0
    %601 = vmatprep.subr.mxu0 0.0
    %602 = vmatpush1.xpose.msra.mxu0 0.0
    %603 = vmatprep.subr.mxu0 0.0
    %604 = vmatpush1.xpose.msra.mxu0 0.0
    %605 = vmatprep.subr.mxu0 0.0
    %606 = vmatpush1.xpose.msra.mxu0 0.0
    %607 = vmatprep.subr.mxu0 0.0
    %608 = vmatpush1.xpose.msra.mxu0 0.0
    %609 = vmatprep.subr.mxu0 0.0
    %610 = vmatpush1.xpose.msra.mxu0 0.0
    %611 = vmatprep.subr.mxu0 0.0
    %612 = vmatpush1.xpose.msra.mxu0 0.0
    %613 = vmatprep.subr.mxu0 0.0
    %614 = vmatpush1.xpose.msra.mxu0 0.0
    %615 = vmatprep.subr.mxu0 0.0
    %616 = vmatpush1.xpose.msra.mxu0 0.0
    %617 = vmatprep.subr.mxu0 0.0
    %618 = vmatpush1.xpose.msra.mxu0 0.0
    %619 = vmatprep.subr.mxu0 0.0
    %620 = vmatpush1.xpose.msra.mxu0 0.0
    %621 = vmatprep.subr.mxu0 0.0
    %622 = vmatpush1.xpose.msra.mxu0 0.0
    %623 = vmatprep.subr.mxu0 0.0
    %624 = vmatpush1.xpose.msra.mxu0 0.0
    %625 = vmatprep.subr.mxu0 0.0
    %626 = vmatpush1.xpose.msra.mxu0 0.0
    %627 = vmatprep.subr.mxu0 0.0
    %628 = vmatpush1.xpose.msra.mxu0 0.0
    %629 = vmatprep.subr.mxu0 0.0
    %630 = vmatpush1.xpose.msra.mxu0 0.0
    %631 = vmatprep.subr.mxu0 0.0
    %632 = vmatpush1.xpose.msra.mxu0 0.0
    %633 = vmatprep.subr.mxu0 0.0
    %634 = vmatpush1.xpose.msra.mxu0 0.0
    %635 = vmatprep.subr.mxu0 0.0
    %636 = vmatpush1.xpose.msra.mxu0 0.0
    %637 = vmatprep.subr.mxu0 0.0
    %638 = vmatpush1.xpose.msra.mxu0 0.0
    %639 = vmatprep.subr.mxu0 0.0
    %640 = vmatpush1.xpose.msra.mxu0 0.0
    %641 = vmatprep.subr.mxu0 0.0
    %642 = vmatpush1.xpose.msra.mxu0 0.0
    %643 = vmatprep.subr.mxu0 0.0
    %644 = vmatpush1.xpose.msra.mxu0 0.0
    %645 = vmatprep.subr.mxu0 0.0
    %646 = vmatpush1.xpose.msra.mxu0 0.0
    %647 = vmatprep.subr.mxu0 0.0
    %648 = vmatpush1.xpose.msra.mxu0 0.0
    %649 = vmatprep.subr.mxu0 0.0
    %650 = vmatpush1.xpose.msra.mxu0 0.0
    %651 = vmatprep.subr.mxu0 0.0
    %652 = vmatpush1.xpose.msra.mxu0 0.0
    %653 = vmatprep.mubr.f32.mxu0 0.0
    %654 = vmatmul.mubr.f32.gmra.mrb[0].mxu0 %v585
    %v655 = vpop.f32.mrb[0].mxu0
    %v656 = vadd.f32 0.0, %v655
    %v657 = vpop.f32.mrb[0].mxu0
    %658 = vdwg.mxu0
    %659 = vrot.lane.b32.xlu0 %v199, 96
    %v660 = vpop.permute.xlu0 %659
    %v661 = vsel %vm204, %v199, 0
    %v663 = vsel %vm204, %v660, 0
    %665 = vmatprep.subr.mxu0 0.0
    %666 = vmatpush1.xpose.msra.mxu0 %v663
    %667 = vmatprep.subr.mxu0 0.0
    %668 = vmatpush1.xpose.msra.mxu0 0.0
    %669 = vmatprep.subr.mxu0 0.0
    %670 = vmatpush1.xpose.msra.mxu0 0.0
    %671 = vmatprep.subr.mxu0 0.0
    %672 = vmatpush1.xpose.msra.mxu0 0.0
    %673 = vmatprep.subr.mxu0 0.0
    %674 = vmatpush1.xpose.msra.mxu0 0.0
    %675 = vmatprep.subr.mxu0 0.0
    %676 = vmatpush1.xpose.msra.mxu0 0.0
    %677 = vmatprep.subr.mxu0 0.0
    %678 = vmatpush1.xpose.msra.mxu0 0.0
    %679 = vmatprep.subr.mxu0 0.0
    %680 = vmatpush1.xpose.msra.mxu0 0.0
    %681 = vmatprep.subr.mxu0 0.0
    %682 = vmatpush1.xpose.msra.mxu0 0.0
    %683 = vmatprep.subr.mxu0 0.0
    %684 = vmatpush1.xpose.msra.mxu0 0.0
    %685 = vmatprep.subr.mxu0 0.0
    %686 = vmatpush1.xpose.msra.mxu0 0.0
    %687 = vmatprep.subr.mxu0 0.0
    %688 = vmatpush1.xpose.msra.mxu0 0.0
    %689 = vmatprep.subr.mxu0 0.0
    %690 = vmatpush1.xpose.msra.mxu0 0.0
    %691 = vmatprep.subr.mxu0 0.0
    %692 = vmatpush1.xpose.msra.mxu0 0.0
    %693 = vmatprep.subr.mxu0 0.0
    %694 = vmatpush1.xpose.msra.mxu0 0.0
    %695 = vmatprep.subr.mxu0 0.0
    %696 = vmatpush1.xpose.msra.mxu0 0.0
    %697 = vmatprep.subr.mxu0 0.0
    %698 = vmatpush1.xpose.msra.mxu0 0.0
    %699 = vmatprep.subr.mxu0 0.0
    %700 = vmatpush1.xpose.msra.mxu0 0.0
    %701 = vmatprep.subr.mxu0 0.0
    %702 = vmatpush1.xpose.msra.mxu0 0.0
    %703 = vmatprep.subr.mxu0 0.0
    %704 = vmatpush1.xpose.msra.mxu0 0.0
    %705 = vmatprep.subr.mxu0 0.0
    %706 = vmatpush1.xpose.msra.mxu0 0.0
    %707 = vmatprep.subr.mxu0 0.0
    %708 = vmatpush1.xpose.msra.mxu0 0.0
    %709 = vmatprep.subr.mxu0 0.0
    %710 = vmatpush1.xpose.msra.mxu0 0.0
    %711 = vmatprep.subr.mxu0 0.0
    %712 = vmatpush1.xpose.msra.mxu0 0.0
    %713 = vmatprep.subr.mxu0 0.0
    %714 = vmatpush1.xpose.msra.mxu0 0.0
    %715 = vmatprep.subr.mxu0 0.0
    %716 = vmatpush1.xpose.msra.mxu0 0.0
    %717 = vmatprep.subr.mxu0 0.0
    %718 = vmatpush1.xpose.msra.mxu0 0.0
    %719 = vmatprep.subr.mxu0 0.0
    %720 = vmatpush1.xpose.msra.mxu0 0.0
    %721 = vmatprep.subr.mxu0 0.0
    %722 = vmatpush1.xpose.msra.mxu0 0.0
    %723 = vmatprep.subr.mxu0 0.0
    %724 = vmatpush1.xpose.msra.mxu0 0.0
    %725 = vmatprep.subr.mxu0 0.0
    %726 = vmatpush1.xpose.msra.mxu0 0.0
    %727 = vmatprep.subr.mxu0 0.0
    %728 = vmatpush1.xpose.msra.mxu0 0.0
    %729 = vmatprep.mubr.f32.mxu0 0.0
    %730 = vmatmul.mubr.f32.gmra.mrb[0].mxu0 %v661
    %v731 = vpop.f32.mrb[0].mxu0
    %v732 = vadd.f32 0.0, %v731
    %v733 = vpop.f32.mrb[0].mxu0
    %734 = vdwg.mxu0
    %735 = vrot.lane.b32.xlu0 %v201, 96
    %v736 = vpop.permute.xlu0 %735
    %v737 = vsel %vm204, %v201, 0
    %v739 = vsel %vm204, %v736, 0
    %741 = vmatprep.subr.mxu0 0.0
    %742 = vmatpush1.xpose.msra.mxu0 %v739
    %743 = vmatprep.subr.mxu0 0.0
    %744 = vmatpush1.xpose.msra.mxu0 0.0
    %745 = vmatprep.subr.mxu0 0.0
    %746 = vmatpush1.xpose.msra.mxu0 0.0
    %747 = vmatprep.subr.mxu0 0.0
    %748 = vmatpush1.xpose.msra.mxu0 0.0
    %749 = vmatprep.subr.mxu0 0.0
    %750 = vmatpush1.xpose.msra.mxu0 0.0
    %751 = vmatprep.subr.mxu0 0.0
    %752 = vmatpush1.xpose.msra.mxu0 0.0
    %753 = vmatprep.subr.mxu0 0.0
    %754 = vmatpush1.xpose.msra.mxu0 0.0
    %755 = vmatprep.subr.mxu0 0.0
    %756 = vmatpush1.xpose.msra.mxu0 0.0
    %757 = vmatprep.subr.mxu0 0.0
    %758 = vmatpush1.xpose.msra.mxu0 0.0
    %759 = vmatprep.subr.mxu0 0.0
    %760 = vmatpush1.xpose.msra.mxu0 0.0
    %761 = vmatprep.subr.mxu0 0.0
    %762 = vmatpush1.xpose.msra.mxu0 0.0
    %763 = vmatprep.subr.mxu0 0.0
    %764 = vmatpush1.xpose.msra.mxu0 0.0
    %765 = vmatprep.subr.mxu0 0.0
    %766 = vmatpush1.xpose.msra.mxu0 0.0
    %767 = vmatprep.subr.mxu0 0.0
    %768 = vmatpush1.xpose.msra.mxu0 0.0
    %769 = vmatprep.subr.mxu0 0.0
    %770 = vmatpush1.xpose.msra.mxu0 0.0
    %771 = vmatprep.subr.mxu0 0.0
    %772 = vmatpush1.xpose.msra.mxu0 0.0
    %773 = vmatprep.subr.mxu0 0.0
    %774 = vmatpush1.xpose.msra.mxu0 0.0
    %775 = vmatprep.subr.mxu0 0.0
    %776 = vmatpush1.xpose.msra.mxu0 0.0
    %777 = vmatprep.subr.mxu0 0.0
    %778 = vmatpush1.xpose.msra.mxu0 0.0
    %779 = vmatprep.subr.mxu0 0.0
    %780 = vmatpush1.xpose.msra.mxu0 0.0
    %781 = vmatprep.subr.mxu0 0.0
    %782 = vmatpush1.xpose.msra.mxu0 0.0
    %783 = vmatprep.subr.mxu0 0.0
    %784 = vmatpush1.xpose.msra.mxu0 0.0
    %785 = vmatprep.subr.mxu0 0.0
    %786 = vmatpush1.xpose.msra.mxu0 0.0
    %787 = vmatprep.subr.mxu0 0.0
    %788 = vmatpush1.xpose.msra.mxu0 0.0
    %789 = vmatprep.subr.mxu0 0.0
    %790 = vmatpush1.xpose.msra.mxu0 0.0
    %791 = vmatprep.subr.mxu0 0.0
    %792 = vmatpush1.xpose.msra.mxu0 0.0
    %793 = vmatprep.subr.mxu0 0.0
    %794 = vmatpush1.xpose.msra.mxu0 0.0
    %795 = vmatprep.subr.mxu0 0.0
    %796 = vmatpush1.xpose.msra.mxu0 0.0
    %797 = vmatprep.subr.mxu0 0.0
    %798 = vmatpush1.xpose.msra.mxu0 0.0
    %799 = vmatprep.subr.mxu0 0.0
    %800 = vmatpush1.xpose.msra.mxu0 0.0
    %801 = vmatprep.subr.mxu0 0.0
    %802 = vmatpush1.xpose.msra.mxu0 0.0
    %803 = vmatprep.subr.mxu0 0.0
    %804 = vmatpush1.xpose.msra.mxu0 0.0
    %805 = vmatprep.mubr.f32.mxu0 0.0
    %806 = vmatmul.mubr.f32.gmra.mrb[0].mxu0 %v737
    %v807 = vpop.f32.mrb[0].mxu0
    %v808 = vadd.f32 0.0, %v807
    %v809 = vpop.f32.mrb[0].mxu0
    %810 = vdwg.mxu0
    %v811 = vmul.f32 %v276, 0.35355338
    %v812 = vmul.f32 %v352, 0.35355338
    %v813 = vmul.f32 %v428, 0.35355338
    %v814 = vmul.f32 %v504, 0.35355338
    %v815 = vmul.f32 %v580, 0.35355338
    %v816 = vmul.f32 %v656, 0.35355338
    %v817 = vmul.f32 %v732, 0.35355338
    %v818 = vmul.f32 %v808, 0.35355338
    %v819 = vlaneseq
    %v820 = vshrl.u32 %v819, 7
    %v821 = vlaneseq
    %v822 = vand.u32 %v821, 127
    %vm823 = vcmp.le.s32.totalorder %v822, %v820
    %v824 = vsel %vm823, 1, 0
    %vm825 = vcmp.eq.s32.totalorder %v824, 1
    %v826 = vsel %vm825, %v811, -10000.0
    %v827 = vsel %vm825, %v812, -10000.0
    %v828 = vsel %vm825, %v813, -10000.0
    %v829 = vsel %vm825, %v814, -10000.0
    %v830 = vsel %vm825, %v815, -10000.0
    %v831 = vsel %vm825, %v816, -10000.0
    %v832 = vsel %vm825, %v817, -10000.0
    %v833 = vsel %vm825, %v818, -10000.0
    %v834 = vsel %vm204, %v826, -inf
    %835 = vmax.xlane.f32.xlu0 %v834
    %v836 = vpop.xlane.xlu0 %835
    %v837 = vsel %vm204, %v827, -inf
    %838 = vmax.xlane.f32.xlu0 %v837
    %v839 = vpop.xlane.xlu0 %838
    %v840 = vsel %vm204, %v828, -inf
    %841 = vmax.xlane.f32.xlu0 %v840
    %v842 = vpop.xlane.xlu0 %841
    %v843 = vsel %vm204, %v829, -inf
    %844 = vmax.xlane.f32.xlu0 %v843
    %v845 = vpop.xlane.xlu0 %844
    %v846 = vsel %vm204, %v830, -inf
    %847 = vmax.xlane.f32.xlu0 %v846
    %v848 = vpop.xlane.xlu0 %847
    %v849 = vsel %vm204, %v831, -inf
    %850 = vmax.xlane.f32.xlu0 %v849
    %v851 = vpop.xlane.xlu0 %850
    %v852 = vsel %vm204, %v832, -inf
    %853 = vmax.xlane.f32.xlu0 %v852
    %v854 = vpop.xlane.xlu0 %853
    %v855 = vsel %vm204, %v833, -inf
    %856 = vmax.xlane.f32.xlu0 %v855
    %v857 = vpop.xlane.xlu0 %856
    %v858 = vsub.f32 %v826, %v836
    %v859 = vsub.f32 %v827, %v839
    %v860 = vsub.f32 %v828, %v842
    %v861 = vsub.f32 %v829, %v845
    %v862 = vsub.f32 %v830, %v848
    %v863 = vsub.f32 %v831, %v851
    %v864 = vsub.f32 %v832, %v854
    %v865 = vsub.f32 %v833, %v857
    %v866 = vmul.f32 %v858, 1.442695
    %v867 = vpow.pop %v866
    %v868 = vmul.f32 %v859, 1.442695
    %v869 = vpow.pop %v868
    %v870 = vmul.f32 %v860, 1.442695
    %v871 = vpow.pop %v870
    %v872 = vmul.f32 %v861, 1.442695
    %v873 = vpow.pop %v872
    %v874 = vmul.f32 %v862, 1.442695
    %v875 = vpow.pop %v874
    %v876 = vmul.f32 %v863, 1.442695
    %v877 = vpow.pop %v876
    %v878 = vmul.f32 %v864, 1.442695
    %v879 = vpow.pop %v878
    %v880 = vmul.f32 %v865, 1.442695
    %v881 = vpow.pop %v880
    %v882 = vsel %vm204, %v867, 0.0
    %883 = vadd.xlane.f32.xlu0 %v882
    %v884 = vpop.xlane.xlu0 %883
    %v885 = vsel %vm204, %v869, 0.0
    %886 = vadd.xlane.f32.xlu0 %v885
    %v887 = vpop.xlane.xlu0 %886
    %v888 = vsel %vm204, %v871, 0.0
    %889 = vadd.xlane.f32.xlu0 %v888
    %v890 = vpop.xlane.xlu0 %889
    %v891 = vsel %vm204, %v873, 0.0
    %892 = vadd.xlane.f32.xlu0 %v891
    %v893 = vpop.xlane.xlu0 %892
    %v894 = vsel %vm204, %v875, 0.0
    %895 = vadd.xlane.f32.xlu0 %v894
    %v896 = vpop.xlane.xlu0 %895
    %v897 = vsel %vm204, %v877, 0.0
    %898 = vadd.xlane.f32.xlu0 %v897
    %v899 = vpop.xlane.xlu0 %898
    %v900 = vsel %vm204, %v879, 0.0
    %901 = vadd.xlane.f32.xlu0 %v900
    %v902 = vpop.xlane.xlu0 %901
    %v903 = vsel %vm204, %v881, 0.0
    %904 = vadd.xlane.f32.xlu0 %v903
    %v905 = vpop.xlane.xlu0 %904
    %v906 = vrcp.pop %v884
    %v907 = vrcp.pop %v887
    %v908 = vrcp.pop %v890
    %v909 = vrcp.pop %v893
    %v910 = vrcp.pop %v896
    %v911 = vrcp.pop %v899
    %v912 = vrcp.pop %v902
    %v913 = vrcp.pop %v905
    %v914 = vmul.f32 %v867, %v906
    %v915 = vmul.f32 %v869, %v907
    %v916 = vmul.f32 %v871, %v908
    %v917 = vmul.f32 %v873, %v909
    %v918 = vmul.f32 %v875, %v910
    %v919 = vmul.f32 %v877, %v911
    %v920 = vmul.f32 %v879, %v912
    %v921 = vmul.f32 %v881, %v913
    %922 = vst.msk [vmem:[#allocation4] sm:$0xff] %vm204, %v914
    %923 = vst.msk [vmem:[#allocation4 + $0x8] sm:$0xff] %vm204, %v915
    %924 = vst.msk [vmem:[#allocation4 + $0x10] sm:$0xff] %vm204, %v916
    %925 = vst.msk [vmem:[#allocation4 + $0x18] sm:$0xff] %vm204, %v917
    %926 = vst.msk [vmem:[#allocation4 + $0x20] sm:$0xff] %vm204, %v918
    %927 = vst.msk [vmem:[#allocation4 + $0x28] sm:$0xff] %vm204, %v919
    %928 = vst.msk [vmem:[#allocation4 + $0x30] sm:$0xff] %vm204, %v920
    %929 = vst.msk [vmem:[#allocation4 + $0x38] sm:$0xff] %vm204, %v921
    %930 = vrot.lane.b32.xlu0 %v180, 64
    %v931 = vpop.permute.xlu0 %930
    %v934 = vsel %vm204, %v914, 0
    %936 = vmatprep.subr.mxu0 0.0
    %937 = vmatpush1.msra.mxu0 %v931
    %938 = vmatprep.subr.mxu0 0.0
    %939 = vmatpush1.msra.mxu0 0.0
    %940 = vmatprep.subr.mxu0 0.0
    %941 = vmatpush1.msra.mxu0 0.0
    %942 = vmatprep.subr.mxu0 0.0
    %943 = vmatpush1.msra.mxu0 0.0
    %944 = vmatprep.subr.mxu0 0.0
    %945 = vmatpush1.msra.mxu0 0.0
    %946 = vmatprep.subr.mxu0 0.0
    %947 = vmatpush1.msra.mxu0 0.0
    %948 = vmatprep.subr.mxu0 0.0
    %949 = vmatpush1.msra.mxu0 0.0
    %950 = vmatprep.subr.mxu0 0.0
    %951 = vmatpush1.msra.mxu0 0.0
    %952 = vmatprep.subr.mxu0 0.0
    %953 = vmatpush1.msra.mxu0 0.0
    %954 = vmatprep.subr.mxu0 0.0
    %955 = vmatpush1.msra.mxu0 0.0
    %956 = vmatprep.subr.mxu0 0.0
    %957 = vmatpush1.msra.mxu0 0.0
    %958 = vmatprep.subr.mxu0 0.0
    %959 = vmatpush1.msra.mxu0 0.0
    %960 = vmatprep.subr.mxu0 0.0
    %961 = vmatpush1.msra.mxu0 0.0
    %962 = vmatprep.subr.mxu0 0.0
    %963 = vmatpush1.msra.mxu0 0.0
    %964 = vmatprep.subr.mxu0 0.0
    %965 = vmatpush1.msra.mxu0 0.0
    %966 = vmatprep.subr.mxu0 0.0
    %967 = vmatpush1.msra.mxu0 0.0
    %968 = vmatprep.subr.mxu0 0.0
    %969 = vmatpush1.msra.mxu0 0.0
    %970 = vmatprep.subr.mxu0 0.0
    %971 = vmatpush1.msra.mxu0 0.0
    %972 = vmatprep.subr.mxu0 0.0
    %973 = vmatpush1.msra.mxu0 0.0
    %974 = vmatprep.subr.mxu0 0.0
    %975 = vmatpush1.msra.mxu0 0.0
    %976 = vmatprep.subr.mxu0 0.0
    %977 = vmatpush1.msra.mxu0 0.0
    %978 = vmatprep.subr.mxu0 0.0
    %979 = vmatpush1.msra.mxu0 0.0
    %980 = vmatprep.subr.mxu0 0.0
    %981 = vmatpush1.msra.mxu0 0.0
    %982 = vmatprep.subr.mxu0 0.0
    %983 = vmatpush1.msra.mxu0 0.0
    %984 = vmatprep.subr.mxu0 0.0
    %985 = vmatpush1.msra.mxu0 0.0
    %986 = vmatprep.subr.mxu0 0.0
    %987 = vmatpush1.msra.mxu0 0.0
    %988 = vmatprep.subr.mxu0 0.0
    %989 = vmatpush1.msra.mxu0 0.0
    %990 = vmatprep.subr.mxu0 0.0
    %991 = vmatpush1.msra.mxu0 0.0
    %992 = vmatprep.subr.mxu0 0.0
    %993 = vmatpush1.msra.mxu0 0.0
    %994 = vmatprep.subr.mxu0 0.0
    %995 = vmatpush1.msra.mxu0 0.0
    %996 = vmatprep.subr.mxu0 0.0
    %997 = vmatpush1.msra.mxu0 0.0
    %998 = vmatprep.subr.mxu0 0.0
    %999 = vmatpush1.msra.mxu0 0.0
    %1000 = vmatprep.mubr.f32.mxu0 0.0
    %1001 = vmatmul.mubr.f32.gmra.mrb[0].mxu0 %v934
    %v1002 = vpop.f32.mrb[0].mxu0
    %v1003 = vadd.f32 0.0, %v1002
    %v1004 = vpop.f32.mrb[0].mxu0
    %1005 = vdwg.mxu0
    %1006 = vrot.lane.b32.xlu0 %v190, 64
    %v1007 = vpop.permute.xlu0 %1006
    %v1010 = vsel %vm204, %v915, 0
    %1012 = vmatprep.subr.mxu0 0.0
    %1013 = vmatpush1.msra.mxu0 %v1007
    %1014 = vmatprep.subr.mxu0 0.0
    %1015 = vmatpush1.msra.mxu0 0.0
    %1016 = vmatprep.subr.mxu0 0.0
    %1017 = vmatpush1.msra.mxu0 0.0
    %1018 = vmatprep.subr.mxu0 0.0
    %1019 = vmatpush1.msra.mxu0 0.0
    %1020 = vmatprep.subr.mxu0 0.0
    %1021 = vmatpush1.msra.mxu0 0.0
    %1022 = vmatprep.subr.mxu0 0.0
    %1023 = vmatpush1.msra.mxu0 0.0
    %1024 = vmatprep.subr.mxu0 0.0
    %1025 = vmatpush1.msra.mxu0 0.0
    %1026 = vmatprep.subr.mxu0 0.0
    %1027 = vmatpush1.msra.mxu0 0.0
    %1028 = vmatprep.subr.mxu0 0.0
    %1029 = vmatpush1.msra.mxu0 0.0
    %1030 = vmatprep.subr.mxu0 0.0
    %1031 = vmatpush1.msra.mxu0 0.0
    %1032 = vmatprep.subr.mxu0 0.0
    %1033 = vmatpush1.msra.mxu0 0.0
    %1034 = vmatprep.subr.mxu0 0.0
    %1035 = vmatpush1.msra.mxu0 0.0
    %1036 = vmatprep.subr.mxu0 0.0
    %1037 = vmatpush1.msra.mxu0 0.0
    %1038 = vmatprep.subr.mxu0 0.0
    %1039 = vmatpush1.msra.mxu0 0.0
    %1040 = vmatprep.subr.mxu0 0.0
    %1041 = vmatpush1.msra.mxu0 0.0
    %1042 = vmatprep.subr.mxu0 0.0
    %1043 = vmatpush1.msra.mxu0 0.0
    %1044 = vmatprep.subr.mxu0 0.0
    %1045 = vmatpush1.msra.mxu0 0.0
    %1046 = vmatprep.subr.mxu0 0.0
    %1047 = vmatpush1.msra.mxu0 0.0
    %1048 = vmatprep.subr.mxu0 0.0
    %1049 = vmatpush1.msra.mxu0 0.0
    %1050 = vmatprep.subr.mxu0 0.0
    %1051 = vmatpush1.msra.mxu0 0.0
    %1052 = vmatprep.subr.mxu0 0.0
    %1053 = vmatpush1.msra.mxu0 0.0
    %1054 = vmatprep.subr.mxu0 0.0
    %1055 = vmatpush1.msra.mxu0 0.0
    %1056 = vmatprep.subr.mxu0 0.0
    %1057 = vmatpush1.msra.mxu0 0.0
    %1058 = vmatprep.subr.mxu0 0.0
    %1059 = vmatpush1.msra.mxu0 0.0
    %1060 = vmatprep.subr.mxu0 0.0
    %1061 = vmatpush1.msra.mxu0 0.0
    %1062 = vmatprep.subr.mxu0 0.0
    %1063 = vmatpush1.msra.mxu0 0.0
    %1064 = vmatprep.subr.mxu0 0.0
    %1065 = vmatpush1.msra.mxu0 0.0
    %1066 = vmatprep.subr.mxu0 0.0
    %1067 = vmatpush1.msra.mxu0 0.0
    %1068 = vmatprep.subr.mxu0 0.0
    %1069 = vmatpush1.msra.mxu0 0.0
    %1070 = vmatprep.subr.mxu0 0.0
    %1071 = vmatpush1.msra.mxu0 0.0
    %1072 = vmatprep.subr.mxu0 0.0
    %1073 = vmatpush1.msra.mxu0 0.0
    %1074 = vmatprep.subr.mxu0 0.0
    %1075 = vmatpush1.msra.mxu0 0.0
    %1076 = vmatprep.mubr.f32.mxu0 0.0
    %1077 = vmatmul.mubr.f32.gmra.mrb[0].mxu0 %v1010
    %v1078 = vpop.f32.mrb[0].mxu0
    %v1079 = vadd.f32 0.0, %v1078
    %v1080 = vpop.f32.mrb[0].mxu0
    %1081 = vdwg.mxu0
    %1082 = vrot.lane.b32.xlu0 %v192, 64
    %v1083 = vpop.permute.xlu0 %1082
    %v1086 = vsel %vm204, %v916, 0
    %1088 = vmatprep.subr.mxu0 0.0
    %1089 = vmatpush1.msra.mxu0 %v1083
    %1090 = vmatprep.subr.mxu0 0.0
    %1091 = vmatpush1.msra.mxu0 0.0
    %1092 = vmatprep.subr.mxu0 0.0
    %1093 = vmatpush1.msra.mxu0 0.0
    %1094 = vmatprep.subr.mxu0 0.0
    %1095 = vmatpush1.msra.mxu0 0.0
    %1096 = vmatprep.subr.mxu0 0.0
    %1097 = vmatpush1.msra.mxu0 0.0
    %1098 = vmatprep.subr.mxu0 0.0
    %1099 = vmatpush1.msra.mxu0 0.0
    %1100 = vmatprep.subr.mxu0 0.0
    %1101 = vmatpush1.msra.mxu0 0.0
    %1102 = vmatprep.subr.mxu0 0.0
    %1103 = vmatpush1.msra.mxu0 0.0
    %1104 = vmatprep.subr.mxu0 0.0
    %1105 = vmatpush1.msra.mxu0 0.0
    %1106 = vmatprep.subr.mxu0 0.0
    %1107 = vmatpush1.msra.mxu0 0.0
    %1108 = vmatprep.subr.mxu0 0.0
    %1109 = vmatpush1.msra.mxu0 0.0
    %1110 = vmatprep.subr.mxu0 0.0
    %1111 = vmatpush1.msra.mxu0 0.0
    %1112 = vmatprep.subr.mxu0 0.0
    %1113 = vmatpush1.msra.mxu0 0.0
    %1114 = vmatprep.subr.mxu0 0.0
    %1115 = vmatpush1.msra.mxu0 0.0
    %1116 = vmatprep.subr.mxu0 0.0
    %1117 = vmatpush1.msra.mxu0 0.0
    %1118 = vmatprep.subr.mxu0 0.0
    %1119 = vmatpush1.msra.mxu0 0.0
    %1120 = vmatprep.subr.mxu0 0.0
    %1121 = vmatpush1.msra.mxu0 0.0
    %1122 = vmatprep.subr.mxu0 0.0
    %1123 = vmatpush1.msra.mxu0 0.0
    %1124 = vmatprep.subr.mxu0 0.0
    %1125 = vmatpush1.msra.mxu0 0.0
    %1126 = vmatprep.subr.mxu0 0.0
    %1127 = vmatpush1.msra.mxu0 0.0
    %1128 = vmatprep.subr.mxu0 0.0
    %1129 = vmatpush1.msra.mxu0 0.0
    %1130 = vmatprep.subr.mxu0 0.0
    %1131 = vmatpush1.msra.mxu0 0.0
    %1132 = vmatprep.subr.mxu0 0.0
    %1133 = vmatpush1.msra.mxu0 0.0
    %1134 = vmatprep.subr.mxu0 0.0
    %1135 = vmatpush1.msra.mxu0 0.0
    %1136 = vmatprep.subr.mxu0 0.0
    %1137 = vmatpush1.msra.mxu0 0.0
    %1138 = vmatprep.subr.mxu0 0.0
    %1139 = vmatpush1.msra.mxu0 0.0
    %1140 = vmatprep.subr.mxu0 0.0
    %1141 = vmatpush1.msra.mxu0 0.0
    %1142 = vmatprep.subr.mxu0 0.0
    %1143 = vmatpush1.msra.mxu0 0.0
    %1144 = vmatprep.subr.mxu0 0.0
    %1145 = vmatpush1.msra.mxu0 0.0
    %1146 = vmatprep.subr.mxu0 0.0
    %1147 = vmatpush1.msra.mxu0 0.0
    %1148 = vmatprep.subr.mxu0 0.0
    %1149 = vmatpush1.msra.mxu0 0.0
    %1150 = vmatprep.subr.mxu0 0.0
    %1151 = vmatpush1.msra.mxu0 0.0
    %1152 = vmatprep.mubr.f32.mxu0 0.0
    %1153 = vmatmul.mubr.f32.gmra.mrb[0].mxu0 %v1086
    %v1154 = vpop.f32.mrb[0].mxu0
    %v1155 = vadd.f32 0.0, %v1154
    %v1156 = vpop.f32.mrb[0].mxu0
    %1157 = vdwg.mxu0
    %1158 = vrot.lane.b32.xlu0 %v194, 64
    %v1159 = vpop.permute.xlu0 %1158
    %v1162 = vsel %vm204, %v917, 0
    %1164 = vmatprep.subr.mxu0 0.0
    %1165 = vmatpush1.msra.mxu0 %v1159
    %1166 = vmatprep.subr.mxu0 0.0
    %1167 = vmatpush1.msra.mxu0 0.0
    %1168 = vmatprep.subr.mxu0 0.0
    %1169 = vmatpush1.msra.mxu0 0.0
    %1170 = vmatprep.subr.mxu0 0.0
    %1171 = vmatpush1.msra.mxu0 0.0
    %1172 = vmatprep.subr.mxu0 0.0
    %1173 = vmatpush1.msra.mxu0 0.0
    %1174 = vmatprep.subr.mxu0 0.0
    %1175 = vmatpush1.msra.mxu0 0.0
    %1176 = vmatprep.subr.mxu0 0.0
    %1177 = vmatpush1.msra.mxu0 0.0
    %1178 = vmatprep.subr.mxu0 0.0
    %1179 = vmatpush1.msra.mxu0 0.0
    %1180 = vmatprep.subr.mxu0 0.0
    %1181 = vmatpush1.msra.mxu0 0.0
    %1182 = vmatprep.subr.mxu0 0.0
    %1183 = vmatpush1.msra.mxu0 0.0
    %1184 = vmatprep.subr.mxu0 0.0
    %1185 = vmatpush1.msra.mxu0 0.0
    %1186 = vmatprep.subr.mxu0 0.0
    %1187 = vmatpush1.msra.mxu0 0.0
    %1188 = vmatprep.subr.mxu0 0.0
    %1189 = vmatpush1.msra.mxu0 0.0
    %1190 = vmatprep.subr.mxu0 0.0
    %1191 = vmatpush1.msra.mxu0 0.0
    %1192 = vmatprep.subr.mxu0 0.0
    %1193 = vmatpush1.msra.mxu0 0.0
    %1194 = vmatprep.subr.mxu0 0.0
    %1195 = vmatpush1.msra.mxu0 0.0
    %1196 = vmatprep.subr.mxu0 0.0
    %1197 = vmatpush1.msra.mxu0 0.0
    %1198 = vmatprep.subr.mxu0 0.0
    %1199 = vmatpush1.msra.mxu0 0.0
    %1200 = vmatprep.subr.mxu0 0.0
    %1201 = vmatpush1.msra.mxu0 0.0
    %1202 = vmatprep.subr.mxu0 0.0
    %1203 = vmatpush1.msra.mxu0 0.0
    %1204 = vmatprep.subr.mxu0 0.0
    %1205 = vmatpush1.msra.mxu0 0.0
    %1206 = vmatprep.subr.mxu0 0.0
    %1207 = vmatpush1.msra.mxu0 0.0
    %1208 = vmatprep.subr.mxu0 0.0
    %1209 = vmatpush1.msra.mxu0 0.0
    %1210 = vmatprep.subr.mxu0 0.0
    %1211 = vmatpush1.msra.mxu0 0.0
    %1212 = vmatprep.subr.mxu0 0.0
    %1213 = vmatpush1.msra.mxu0 0.0
    %1214 = vmatprep.subr.mxu0 0.0
    %1215 = vmatpush1.msra.mxu0 0.0
    %1216 = vmatprep.subr.mxu0 0.0
    %1217 = vmatpush1.msra.mxu0 0.0
    %1218 = vmatprep.subr.mxu0 0.0
    %1219 = vmatpush1.msra.mxu0 0.0
    %1220 = vmatprep.subr.mxu0 0.0
    %1221 = vmatpush1.msra.mxu0 0.0
    %1222 = vmatprep.subr.mxu0 0.0
    %1223 = vmatpush1.msra.mxu0 0.0
    %1224 = vmatprep.subr.mxu0 0.0
    %1225 = vmatpush1.msra.mxu0 0.0
    %1226 = vmatprep.subr.mxu0 0.0
    %1227 = vmatpush1.msra.mxu0 0.0
    %1228 = vmatprep.mubr.f32.mxu0 0.0
    %1229 = vmatmul.mubr.f32.gmra.mrb[0].mxu0 %v1162
    %v1230 = vpop.f32.mrb[0].mxu0
    %v1231 = vadd.f32 0.0, %v1230
    %v1232 = vpop.f32.mrb[0].mxu0
    %1233 = vdwg.mxu0
    %1234 = vrot.lane.b32.xlu0 %v185, 64
    %v1235 = vpop.permute.xlu0 %1234
    %v1238 = vsel %vm204, %v918, 0
    %1240 = vmatprep.subr.mxu0 0.0
    %1241 = vmatpush1.msra.mxu0 %v1235
    %1242 = vmatprep.subr.mxu0 0.0
    %1243 = vmatpush1.msra.mxu0 0.0
    %1244 = vmatprep.subr.mxu0 0.0
    %1245 = vmatpush1.msra.mxu0 0.0
    %1246 = vmatprep.subr.mxu0 0.0
    %1247 = vmatpush1.msra.mxu0 0.0
    %1248 = vmatprep.subr.mxu0 0.0
    %1249 = vmatpush1.msra.mxu0 0.0
    %1250 = vmatprep.subr.mxu0 0.0
    %1251 = vmatpush1.msra.mxu0 0.0
    %1252 = vmatprep.subr.mxu0 0.0
    %1253 = vmatpush1.msra.mxu0 0.0
    %1254 = vmatprep.subr.mxu0 0.0
    %1255 = vmatpush1.msra.mxu0 0.0
    %1256 = vmatprep.subr.mxu0 0.0
    %1257 = vmatpush1.msra.mxu0 0.0
    %1258 = vmatprep.subr.mxu0 0.0
    %1259 = vmatpush1.msra.mxu0 0.0
    %1260 = vmatprep.subr.mxu0 0.0
    %1261 = vmatpush1.msra.mxu0 0.0
    %1262 = vmatprep.subr.mxu0 0.0
    %1263 = vmatpush1.msra.mxu0 0.0
    %1264 = vmatprep.subr.mxu0 0.0
    %1265 = vmatpush1.msra.mxu0 0.0
    %1266 = vmatprep.subr.mxu0 0.0
    %1267 = vmatpush1.msra.mxu0 0.0
    %1268 = vmatprep.subr.mxu0 0.0
    %1269 = vmatpush1.msra.mxu0 0.0
    %1270 = vmatprep.subr.mxu0 0.0
    %1271 = vmatpush1.msra.mxu0 0.0
    %1272 = vmatprep.subr.mxu0 0.0
    %1273 = vmatpush1.msra.mxu0 0.0
    %1274 = vmatprep.subr.mxu0 0.0
    %1275 = vmatpush1.msra.mxu0 0.0
    %1276 = vmatprep.subr.mxu0 0.0
    %1277 = vmatpush1.msra.mxu0 0.0
    %1278 = vmatprep.subr.mxu0 0.0
    %1279 = vmatpush1.msra.mxu0 0.0
    %1280 = vmatprep.subr.mxu0 0.0
    %1281 = vmatpush1.msra.mxu0 0.0
    %1282 = vmatprep.subr.mxu0 0.0
    %1283 = vmatpush1.msra.mxu0 0.0
    %1284 = vmatprep.subr.mxu0 0.0
    %1285 = vmatpush1.msra.mxu0 0.0
    %1286 = vmatprep.subr.mxu0 0.0
    %1287 = vmatpush1.msra.mxu0 0.0
    %1288 = vmatprep.subr.mxu0 0.0
    %1289 = vmatpush1.msra.mxu0 0.0
    %1290 = vmatprep.subr.mxu0 0.0
    %1291 = vmatpush1.msra.mxu0 0.0
    %1292 = vmatprep.subr.mxu0 0.0
    %1293 = vmatpush1.msra.mxu0 0.0
    %1294 = vmatprep.subr.mxu0 0.0
    %1295 = vmatpush1.msra.mxu0 0.0
    %1296 = vmatprep.subr.mxu0 0.0
    %1297 = vmatpush1.msra.mxu0 0.0
    %1298 = vmatprep.subr.mxu0 0.0
    %1299 = vmatpush1.msra.mxu0 0.0
    %1300 = vmatprep.subr.mxu0 0.0
    %1301 = vmatpush1.msra.mxu0 0.0
    %1302 = vmatprep.subr.mxu0 0.0
    %1303 = vmatpush1.msra.mxu0 0.0
    %1304 = vmatprep.mubr.f32.mxu0 0.0
    %1305 = vmatmul.mubr.f32.gmra.mrb[0].mxu0 %v1238
    %v1306 = vpop.f32.mrb[0].mxu0
    %v1307 = vadd.f32 0.0, %v1306
    %v1308 = vpop.f32.mrb[0].mxu0
    %1309 = vdwg.mxu0
    %1310 = vrot.lane.b32.xlu0 %v197, 64
    %v1311 = vpop.permute.xlu0 %1310
    %v1314 = vsel %vm204, %v919, 0
    %1316 = vmatprep.subr.mxu0 0.0
    %1317 = vmatpush1.msra.mxu0 %v1311
    %1318 = vmatprep.subr.mxu0 0.0
    %1319 = vmatpush1.msra.mxu0 0.0
    %1320 = vmatprep.subr.mxu0 0.0
    %1321 = vmatpush1.msra.mxu0 0.0
    %1322 = vmatprep.subr.mxu0 0.0
    %1323 = vmatpush1.msra.mxu0 0.0
    %1324 = vmatprep.subr.mxu0 0.0
    %1325 = vmatpush1.msra.mxu0 0.0
    %1326 = vmatprep.subr.mxu0 0.0
    %1327 = vmatpush1.msra.mxu0 0.0
    %1328 = vmatprep.subr.mxu0 0.0
    %1329 = vmatpush1.msra.mxu0 0.0
    %1330 = vmatprep.subr.mxu0 0.0
    %1331 = vmatpush1.msra.mxu0 0.0
    %1332 = vmatprep.subr.mxu0 0.0
    %1333 = vmatpush1.msra.mxu0 0.0
    %1334 = vmatprep.subr.mxu0 0.0
    %1335 = vmatpush1.msra.mxu0 0.0
    %1336 = vmatprep.subr.mxu0 0.0
    %1337 = vmatpush1.msra.mxu0 0.0
    %1338 = vmatprep.subr.mxu0 0.0
    %1339 = vmatpush1.msra.mxu0 0.0
    %1340 = vmatprep.subr.mxu0 0.0
    %1341 = vmatpush1.msra.mxu0 0.0
    %1342 = vmatprep.subr.mxu0 0.0
    %1343 = vmatpush1.msra.mxu0 0.0
    %1344 = vmatprep.subr.mxu0 0.0
    %1345 = vmatpush1.msra.mxu0 0.0
    %1346 = vmatprep.subr.mxu0 0.0
    %1347 = vmatpush1.msra.mxu0 0.0
    %1348 = vmatprep.subr.mxu0 0.0
    %1349 = vmatpush1.msra.mxu0 0.0
    %1350 = vmatprep.subr.mxu0 0.0
    %1351 = vmatpush1.msra.mxu0 0.0
    %1352 = vmatprep.subr.mxu0 0.0
    %1353 = vmatpush1.msra.mxu0 0.0
    %1354 = vmatprep.subr.mxu0 0.0
    %1355 = vmatpush1.msra.mxu0 0.0
    %1356 = vmatprep.subr.mxu0 0.0
    %1357 = vmatpush1.msra.mxu0 0.0
    %1358 = vmatprep.subr.mxu0 0.0
    %1359 = vmatpush1.msra.mxu0 0.0
    %1360 = vmatprep.subr.mxu0 0.0
    %1361 = vmatpush1.msra.mxu0 0.0
    %1362 = vmatprep.subr.mxu0 0.0
    %1363 = vmatpush1.msra.mxu0 0.0
    %1364 = vmatprep.subr.mxu0 0.0
    %1365 = vmatpush1.msra.mxu0 0.0
    %1366 = vmatprep.subr.mxu0 0.0
    %1367 = vmatpush1.msra.mxu0 0.0
    %1368 = vmatprep.subr.mxu0 0.0
    %1369 = vmatpush1.msra.mxu0 0.0
    %1370 = vmatprep.subr.mxu0 0.0
    %1371 = vmatpush1.msra.mxu0 0.0
    %1372 = vmatprep.subr.mxu0 0.0
    %1373 = vmatpush1.msra.mxu0 0.0
    %1374 = vmatprep.subr.mxu0 0.0
    %1375 = vmatpush1.msra.mxu0 0.0
    %1376 = vmatprep.subr.mxu0 0.0
    %1377 = vmatpush1.msra.mxu0 0.0
    %1378 = vmatprep.subr.mxu0 0.0
    %1379 = vmatpush1.msra.mxu0 0.0
    %1380 = vmatprep.mubr.f32.mxu0 0.0
    %1381 = vmatmul.mubr.f32.gmra.mrb[0].mxu0 %v1314
    %v1382 = vpop.f32.mrb[0].mxu0
    %v1383 = vadd.f32 0.0, %v1382
    %v1384 = vpop.f32.mrb[0].mxu0
    %1385 = vdwg.mxu0
    %1386 = vrot.lane.b32.xlu0 %v199, 64
    %v1387 = vpop.permute.xlu0 %1386
    %v1390 = vsel %vm204, %v920, 0
    %1392 = vmatprep.subr.mxu0 0.0
    %1393 = vmatpush1.msra.mxu0 %v1387
    %1394 = vmatprep.subr.mxu0 0.0
    %1395 = vmatpush1.msra.mxu0 0.0
    %1396 = vmatprep.subr.mxu0 0.0
    %1397 = vmatpush1.msra.mxu0 0.0
    %1398 = vmatprep.subr.mxu0 0.0
    %1399 = vmatpush1.msra.mxu0 0.0
    %1400 = vmatprep.subr.mxu0 0.0
    %1401 = vmatpush1.msra.mxu0 0.0
    %1402 = vmatprep.subr.mxu0 0.0
    %1403 = vmatpush1.msra.mxu0 0.0
    %1404 = vmatprep.subr.mxu0 0.0
    %1405 = vmatpush1.msra.mxu0 0.0
    %1406 = vmatprep.subr.mxu0 0.0
    %1407 = vmatpush1.msra.mxu0 0.0
    %1408 = vmatprep.subr.mxu0 0.0
    %1409 = vmatpush1.msra.mxu0 0.0
    %1410 = vmatprep.subr.mxu0 0.0
    %1411 = vmatpush1.msra.mxu0 0.0
    %1412 = vmatprep.subr.mxu0 0.0
    %1413 = vmatpush1.msra.mxu0 0.0
    %1414 = vmatprep.subr.mxu0 0.0
    %1415 = vmatpush1.msra.mxu0 0.0
    %1416 = vmatprep.subr.mxu0 0.0
    %1417 = vmatpush1.msra.mxu0 0.0
    %1418 = vmatprep.subr.mxu0 0.0
    %1419 = vmatpush1.msra.mxu0 0.0
    %1420 = vmatprep.subr.mxu0 0.0
    %1421 = vmatpush1.msra.mxu0 0.0
    %1422 = vmatprep.subr.mxu0 0.0
    %1423 = vmatpush1.msra.mxu0 0.0
    %1424 = vmatprep.subr.mxu0 0.0
    %1425 = vmatpush1.msra.mxu0 0.0
    %1426 = vmatprep.subr.mxu0 0.0
    %1427 = vmatpush1.msra.mxu0 0.0
    %1428 = vmatprep.subr.mxu0 0.0
    %1429 = vmatpush1.msra.mxu0 0.0
    %1430 = vmatprep.subr.mxu0 0.0
    %1431 = vmatpush1.msra.mxu0 0.0
    %1432 = vmatprep.subr.mxu0 0.0
    %1433 = vmatpush1.msra.mxu0 0.0
    %1434 = vmatprep.subr.mxu0 0.0
    %1435 = vmatpush1.msra.mxu0 0.0
    %1436 = vmatprep.subr.mxu0 0.0
    %1437 = vmatpush1.msra.mxu0 0.0
    %1438 = vmatprep.subr.mxu0 0.0
    %1439 = vmatpush1.msra.mxu0 0.0
    %1440 = vmatprep.subr.mxu0 0.0
    %1441 = vmatpush1.msra.mxu0 0.0
    %1442 = vmatprep.subr.mxu0 0.0
    %1443 = vmatpush1.msra.mxu0 0.0
    %1444 = vmatprep.subr.mxu0 0.0
    %1445 = vmatpush1.msra.mxu0 0.0
    %1446 = vmatprep.subr.mxu0 0.0
    %1447 = vmatpush1.msra.mxu0 0.0
    %1448 = vmatprep.subr.mxu0 0.0
    %1449 = vmatpush1.msra.mxu0 0.0
    %1450 = vmatprep.subr.mxu0 0.0
    %1451 = vmatpush1.msra.mxu0 0.0
    %1452 = vmatprep.subr.mxu0 0.0
    %1453 = vmatpush1.msra.mxu0 0.0
    %1454 = vmatprep.subr.mxu0 0.0
    %1455 = vmatpush1.msra.mxu0 0.0
    %1456 = vmatprep.mubr.f32.mxu0 0.0
    %1457 = vmatmul.mubr.f32.gmra.mrb[0].mxu0 %v1390
    %v1458 = vpop.f32.mrb[0].mxu0
    %v1459 = vadd.f32 0.0, %v1458
    %v1460 = vpop.f32.mrb[0].mxu0
    %1461 = vdwg.mxu0
    %1462 = vrot.lane.b32.xlu0 %v201, 64
    %v1463 = vpop.permute.xlu0 %1462
    %v1466 = vsel %vm204, %v921, 0
    %1468 = vmatprep.subr.mxu0 0.0
    %1469 = vmatpush1.msra.mxu0 %v1463
    %1470 = vmatprep.subr.mxu0 0.0
    %1471 = vmatpush1.msra.mxu0 0.0
    %1472 = vmatprep.subr.mxu0 0.0
    %1473 = vmatpush1.msra.mxu0 0.0
    %1474 = vmatprep.subr.mxu0 0.0
    %1475 = vmatpush1.msra.mxu0 0.0
    %1476 = vmatprep.subr.mxu0 0.0
    %1477 = vmatpush1.msra.mxu0 0.0
    %1478 = vmatprep.subr.mxu0 0.0
    %1479 = vmatpush1.msra.mxu0 0.0
    %1480 = vmatprep.subr.mxu0 0.0
    %1481 = vmatpush1.msra.mxu0 0.0
    %1482 = vmatprep.subr.mxu0 0.0
    %1483 = vmatpush1.msra.mxu0 0.0
    %1484 = vmatprep.subr.mxu0 0.0
    %1485 = vmatpush1.msra.mxu0 0.0
    %1486 = vmatprep.subr.mxu0 0.0
    %1487 = vmatpush1.msra.mxu0 0.0
    %1488 = vmatprep.subr.mxu0 0.0
    %1489 = vmatpush1.msra.mxu0 0.0
    %1490 = vmatprep.subr.mxu0 0.0
    %1491 = vmatpush1.msra.mxu0 0.0
    %1492 = vmatprep.subr.mxu0 0.0
    %1493 = vmatpush1.msra.mxu0 0.0
    %1494 = vmatprep.subr.mxu0 0.0
    %1495 = vmatpush1.msra.mxu0 0.0
    %1496 = vmatprep.subr.mxu0 0.0
    %1497 = vmatpush1.msra.mxu0 0.0
    %1498 = vmatprep.subr.mxu0 0.0
    %1499 = vmatpush1.msra.mxu0 0.0
    %1500 = vmatprep.subr.mxu0 0.0
    %1501 = vmatpush1.msra.mxu0 0.0
    %1502 = vmatprep.subr.mxu0 0.0
    %1503 = vmatpush1.msra.mxu0 0.0
    %1504 = vmatprep.subr.mxu0 0.0
    %1505 = vmatpush1.msra.mxu0 0.0
    %1506 = vmatprep.subr.mxu0 0.0
    %1507 = vmatpush1.msra.mxu0 0.0
    %1508 = vmatprep.subr.mxu0 0.0
    %1509 = vmatpush1.msra.mxu0 0.0
    %1510 = vmatprep.subr.mxu0 0.0
    %1511 = vmatpush1.msra.mxu0 0.0
    %1512 = vmatprep.subr.mxu0 0.0
    %1513 = vmatpush1.msra.mxu0 0.0
    %1514 = vmatprep.subr.mxu0 0.0
    %1515 = vmatpush1.msra.mxu0 0.0
    %1516 = vmatprep.subr.mxu0 0.0
    %1517 = vmatpush1.msra.mxu0 0.0
    %1518 = vmatprep.subr.mxu0 0.0
    %1519 = vmatpush1.msra.mxu0 0.0
    %1520 = vmatprep.subr.mxu0 0.0
    %1521 = vmatpush1.msra.mxu0 0.0
    %1522 = vmatprep.subr.mxu0 0.0
    %1523 = vmatpush1.msra.mxu0 0.0
    %1524 = vmatprep.subr.mxu0 0.0
    %1525 = vmatpush1.msra.mxu0 0.0
    %1526 = vmatprep.subr.mxu0 0.0
    %1527 = vmatpush1.msra.mxu0 0.0
    %1528 = vmatprep.subr.mxu0 0.0
    %1529 = vmatpush1.msra.mxu0 0.0
    %1530 = vmatprep.subr.mxu0 0.0
    %1531 = vmatpush1.msra.mxu0 0.0
    %1532 = vmatprep.mubr.f32.mxu0 0.0
    %1533 = vmatmul.mubr.f32.gmra.mrb[0].mxu0 %v1466
    %v1534 = vpop.f32.mrb[0].mxu0
    %v1535 = vadd.f32 0.0, %v1534
    %v1536 = vpop.f32.mrb[0].mxu0
    %1537 = vdwg.mxu0
    %v1538 = vld [vmem:[%s5] sm:$0xff]
    %v1539 = vld [vmem:[%s5 + $0x8] sm:$0xff]
    %v1540 = vld [vmem:[%s5 + $0x10] sm:$0xff]
    %v1541 = vld [vmem:[%s5 + $0x18] sm:$0xff]
    %v1543 = vsel %vm204, %v1003, 0
    %1545 = vmatprep.subr.mxu0 0.0
    %1546 = vmatpush1.msra.mxu0 %v1538
    %1547 = vmatprep.subr.mxu0 0.0
    %1548 = vmatpush1.msra.mxu0 0.0
    %1549 = vmatprep.subr.mxu0 0.0
    %1550 = vmatpush1.msra.mxu0 0.0
    %1551 = vmatprep.subr.mxu0 0.0
    %1552 = vmatpush1.msra.mxu0 0.0
    %1553 = vmatprep.subr.mxu0 0.0
    %1554 = vmatpush1.msra.mxu0 0.0
    %1555 = vmatprep.subr.mxu0 0.0
    %1556 = vmatpush1.msra.mxu0 0.0
    %1557 = vmatprep.subr.mxu0 0.0
    %1558 = vmatpush1.msra.mxu0 0.0
    %1559 = vmatprep.subr.mxu0 0.0
    %1560 = vmatpush1.msra.mxu0 0.0
    %1561 = vmatprep.subr.mxu0 0.0
    %1562 = vmatpush1.msra.mxu0 0.0
    %1563 = vmatprep.subr.mxu0 0.0
    %1564 = vmatpush1.msra.mxu0 0.0
    %1565 = vmatprep.subr.mxu0 0.0
    %1566 = vmatpush1.msra.mxu0 0.0
    %1567 = vmatprep.subr.mxu0 0.0
    %1568 = vmatpush1.msra.mxu0 0.0
    %1569 = vmatprep.subr.mxu0 0.0
    %1570 = vmatpush1.msra.mxu0 0.0
    %1571 = vmatprep.subr.mxu0 0.0
    %1572 = vmatpush1.msra.mxu0 0.0
    %1573 = vmatprep.subr.mxu0 0.0
    %1574 = vmatpush1.msra.mxu0 0.0
    %1575 = vmatprep.subr.mxu0 0.0
    %1576 = vmatpush1.msra.mxu0 0.0
    %1577 = vmatprep.subr.mxu0 0.0
    %1578 = vmatpush1.msra.mxu0 0.0
    %1579 = vmatprep.subr.mxu0 0.0
    %1580 = vmatpush1.msra.mxu0 0.0
    %1581 = vmatprep.subr.mxu0 0.0
    %1582 = vmatpush1.msra.mxu0 0.0
    %1583 = vmatprep.subr.mxu0 0.0
    %1584 = vmatpush1.msra.mxu0 0.0
    %1585 = vmatprep.subr.mxu0 0.0
    %1586 = vmatpush1.msra.mxu0 0.0
    %1587 = vmatprep.subr.mxu0 0.0
    %1588 = vmatpush1.msra.mxu0 0.0
    %1589 = vmatprep.subr.mxu0 0.0
    %1590 = vmatpush1.msra.mxu0 0.0
    %1591 = vmatprep.subr.mxu0 0.0
    %1592 = vmatpush1.msra.mxu0 0.0
    %1593 = vmatprep.subr.mxu0 0.0
    %1594 = vmatpush1.msra.mxu0 0.0
    %1595 = vmatprep.subr.mxu0 0.0
    %1596 = vmatpush1.msra.mxu0 0.0
    %1597 = vmatprep.subr.mxu0 0.0
    %1598 = vmatpush1.msra.mxu0 0.0
    %1599 = vmatprep.subr.mxu0 0.0
    %1600 = vmatpush1.msra.mxu0 0.0
    %1601 = vmatprep.subr.mxu0 0.0
    %1602 = vmatpush1.msra.mxu0 0.0
    %1603 = vmatprep.subr.mxu0 0.0
    %1604 = vmatpush1.msra.mxu0 0.0
    %1605 = vmatprep.subr.mxu0 0.0
    %1606 = vmatpush1.msra.mxu0 0.0
    %1607 = vmatprep.subr.mxu0 0.0
    %1608 = vmatpush1.msra.mxu0 0.0
    %1609 = vmatprep.mubr.f32.mxu0 0.0
    %1610 = vmatmul.mubr.f32.gmra.mrb[0].mxu0 %v1543
    %v1611 = vpop.f32.mrb[0].mxu0
    %v1612 = vadd.f32 0.0, %v1611
    %v1613 = vpop.f32.mrb[0].mxu0
    %1614 = vdwg.mxu0
    %v1616 = vsel %vm204, %v1079, 0
    %1618 = vmatprep.subr.mxu0 0.0
    %1619 = vmatpush1.msra.mxu0 %v1539
    %1620 = vmatprep.subr.mxu0 0.0
    %1621 = vmatpush1.msra.mxu0 0.0
    %1622 = vmatprep.subr.mxu0 0.0
    %1623 = vmatpush1.msra.mxu0 0.0
    %1624 = vmatprep.subr.mxu0 0.0
    %1625 = vmatpush1.msra.mxu0 0.0
    %1626 = vmatprep.subr.mxu0 0.0
    %1627 = vmatpush1.msra.mxu0 0.0
    %1628 = vmatprep.subr.mxu0 0.0
    %1629 = vmatpush1.msra.mxu0 0.0
    %1630 = vmatprep.subr.mxu0 0.0
    %1631 = vmatpush1.msra.mxu0 0.0
    %1632 = vmatprep.subr.mxu0 0.0
    %1633 = vmatpush1.msra.mxu0 0.0
    %1634 = vmatprep.subr.mxu0 0.0
    %1635 = vmatpush1.msra.mxu0 0.0
    %1636 = vmatprep.subr.mxu0 0.0
    %1637 = vmatpush1.msra.mxu0 0.0
    %1638 = vmatprep.subr.mxu0 0.0
    %1639 = vmatpush1.msra.mxu0 0.0
    %1640 = vmatprep.subr.mxu0 0.0
    %1641 = vmatpush1.msra.mxu0 0.0
    %1642 = vmatprep.subr.mxu0 0.0
    %1643 = vmatpush1.msra.mxu0 0.0
    %1644 = vmatprep.subr.mxu0 0.0
    %1645 = vmatpush1.msra.mxu0 0.0
    %1646 = vmatprep.subr.mxu0 0.0
    %1647 = vmatpush1.msra.mxu0 0.0
    %1648 = vmatprep.subr.mxu0 0.0
    %1649 = vmatpush1.msra.mxu0 0.0
    %1650 = vmatprep.subr.mxu0 0.0
    %1651 = vmatpush1.msra.mxu0 0.0
    %1652 = vmatprep.subr.mxu0 0.0
    %1653 = vmatpush1.msra.mxu0 0.0
    %1654 = vmatprep.subr.mxu0 0.0
    %1655 = vmatpush1.msra.mxu0 0.0
    %1656 = vmatprep.subr.mxu0 0.0
    %1657 = vmatpush1.msra.mxu0 0.0
    %1658 = vmatprep.subr.mxu0 0.0
    %1659 = vmatpush1.msra.mxu0 0.0
    %1660 = vmatprep.subr.mxu0 0.0
    %1661 = vmatpush1.msra.mxu0 0.0
    %1662 = vmatprep.subr.mxu0 0.0
    %1663 = vmatpush1.msra.mxu0 0.0
    %1664 = vmatprep.subr.mxu0 0.0
    %1665 = vmatpush1.msra.mxu0 0.0
    %1666 = vmatprep.subr.mxu0 0.0
    %1667 = vmatpush1.msra.mxu0 0.0
    %1668 = vmatprep.subr.mxu0 0.0
    %1669 = vmatpush1.msra.mxu0 0.0
    %1670 = vmatprep.subr.mxu0 0.0
    %1671 = vmatpush1.msra.mxu0 0.0
    %1672 = vmatprep.subr.mxu0 0.0
    %1673 = vmatpush1.msra.mxu0 0.0
    %1674 = vmatprep.subr.mxu0 0.0
    %1675 = vmatpush1.msra.mxu0 0.0
    %1676 = vmatprep.subr.mxu0 0.0
    %1677 = vmatpush1.msra.mxu0 0.0
    %1678 = vmatprep.subr.mxu0 0.0
    %1679 = vmatpush1.msra.mxu0 0.0
    %1680 = vmatprep.subr.mxu0 0.0
    %1681 = vmatpush1.msra.mxu0 0.0
    %1682 = vmatprep.mubr.f32.mxu0 0.0
    %1683 = vmatmul.mubr.f32.gmra.mrb[0].mxu0 %v1616
    %v1684 = vpop.f32.mrb[0].mxu0
    %v1685 = vadd.f32 0.0, %v1684
    %v1686 = vpop.f32.mrb[0].mxu0
    %1687 = vdwg.mxu0
    %v1689 = vsel %vm204, %v1155, 0
    %1691 = vmatprep.subr.mxu0 0.0
    %1692 = vmatpush1.msra.mxu0 %v1540
    %1693 = vmatprep.subr.mxu0 0.0
    %1694 = vmatpush1.msra.mxu0 0.0
    %1695 = vmatprep.subr.mxu0 0.0
    %1696 = vmatpush1.msra.mxu0 0.0
    %1697 = vmatprep.subr.mxu0 0.0
    %1698 = vmatpush1.msra.mxu0 0.0
    %1699 = vmatprep.subr.mxu0 0.0
    %1700 = vmatpush1.msra.mxu0 0.0
    %1701 = vmatprep.subr.mxu0 0.0
    %1702 = vmatpush1.msra.mxu0 0.0
    %1703 = vmatprep.subr.mxu0 0.0
    %1704 = vmatpush1.msra.mxu0 0.0
    %1705 = vmatprep.subr.mxu0 0.0
    %1706 = vmatpush1.msra.mxu0 0.0
    %1707 = vmatprep.subr.mxu0 0.0
    %1708 = vmatpush1.msra.mxu0 0.0
    %1709 = vmatprep.subr.mxu0 0.0
    %1710 = vmatpush1.msra.mxu0 0.0
    %1711 = vmatprep.subr.mxu0 0.0
    %1712 = vmatpush1.msra.mxu0 0.0
    %1713 = vmatprep.subr.mxu0 0.0
    %1714 = vmatpush1.msra.mxu0 0.0
    %1715 = vmatprep.subr.mxu0 0.0
    %1716 = vmatpush1.msra.mxu0 0.0
    %1717 = vmatprep.subr.mxu0 0.0
    %1718 = vmatpush1.msra.mxu0 0.0
    %1719 = vmatprep.subr.mxu0 0.0
    %1720 = vmatpush1.msra.mxu0 0.0
    %1721 = vmatprep.subr.mxu0 0.0
    %1722 = vmatpush1.msra.mxu0 0.0
    %1723 = vmatprep.subr.mxu0 0.0
    %1724 = vmatpush1.msra.mxu0 0.0
    %1725 = vmatprep.subr.mxu0 0.0
    %1726 = vmatpush1.msra.mxu0 0.0
    %1727 = vmatprep.subr.mxu0 0.0
    %1728 = vmatpush1.msra.mxu0 0.0
    %1729 = vmatprep.subr.mxu0 0.0
    %1730 = vmatpush1.msra.mxu0 0.0
    %1731 = vmatprep.subr.mxu0 0.0
    %1732 = vmatpush1.msra.mxu0 0.0
    %1733 = vmatprep.subr.mxu0 0.0
    %1734 = vmatpush1.msra.mxu0 0.0
    %1735 = vmatprep.subr.mxu0 0.0
    %1736 = vmatpush1.msra.mxu0 0.0
    %1737 = vmatprep.subr.mxu0 0.0
    %1738 = vmatpush1.msra.mxu0 0.0
    %1739 = vmatprep.subr.mxu0 0.0
    %1740 = vmatpush1.msra.mxu0 0.0
    %1741 = vmatprep.subr.mxu0 0.0
    %1742 = vmatpush1.msra.mxu0 0.0
    %1743 = vmatprep.subr.mxu0 0.0
    %1744 = vmatpush1.msra.mxu0 0.0
    %1745 = vmatprep.subr.mxu0 0.0
    %1746 = vmatpush1.msra.mxu0 0.0
    %1747 = vmatprep.subr.mxu0 0.0
    %1748 = vmatpush1.msra.mxu0 0.0
    %1749 = vmatprep.subr.mxu0 0.0
    %1750 = vmatpush1.msra.mxu0 0.0
    %1751 = vmatprep.subr.mxu0 0.0
    %1752 = vmatpush1.msra.mxu0 0.0
    %1753 = vmatprep.subr.mxu0 0.0
    %1754 = vmatpush1.msra.mxu0 0.0
    %1755 = vmatprep.mubr.f32.mxu0 0.0
    %1756 = vmatmul.mubr.f32.gmra.mrb[0].mxu0 %v1689
    %v1757 = vpop.f32.mrb[0].mxu0
    %v1758 = vadd.f32 0.0, %v1757
    %v1759 = vpop.f32.mrb[0].mxu0
    %1760 = vdwg.mxu0
    %v1762 = vsel %vm204, %v1231, 0
    %1764 = vmatprep.subr.mxu0 0.0
    %1765 = vmatpush1.msra.mxu0 %v1541
    %1766 = vmatprep.subr.mxu0 0.0
    %1767 = vmatpush1.msra.mxu0 0.0
    %1768 = vmatprep.subr.mxu0 0.0
    %1769 = vmatpush1.msra.mxu0 0.0
    %1770 = vmatprep.subr.mxu0 0.0
    %1771 = vmatpush1.msra.mxu0 0.0
    %1772 = vmatprep.subr.mxu0 0.0
    %1773 = vmatpush1.msra.mxu0 0.0
    %1774 = vmatprep.subr.mxu0 0.0
    %1775 = vmatpush1.msra.mxu0 0.0
    %1776 = vmatprep.subr.mxu0 0.0
    %1777 = vmatpush1.msra.mxu0 0.0
    %1778 = vmatprep.subr.mxu0 0.0
    %1779 = vmatpush1.msra.mxu0 0.0
    %1780 = vmatprep.subr.mxu0 0.0
    %1781 = vmatpush1.msra.mxu0 0.0
    %1782 = vmatprep.subr.mxu0 0.0
    %1783 = vmatpush1.msra.mxu0 0.0
    %1784 = vmatprep.subr.mxu0 0.0
    %1785 = vmatpush1.msra.mxu0 0.0
    %1786 = vmatprep.subr.mxu0 0.0
    %1787 = vmatpush1.msra.mxu0 0.0
    %1788 = vmatprep.subr.mxu0 0.0
    %1789 = vmatpush1.msra.mxu0 0.0
    %1790 = vmatprep.subr.mxu0 0.0
    %1791 = vmatpush1.msra.mxu0 0.0
    %1792 = vmatprep.subr.mxu0 0.0
    %1793 = vmatpush1.msra.mxu0 0.0
    %1794 = vmatprep.subr.mxu0 0.0
    %1795 = vmatpush1.msra.mxu0 0.0
    %1796 = vmatprep.subr.mxu0 0.0
    %1797 = vmatpush1.msra.mxu0 0.0
    %1798 = vmatprep.subr.mxu0 0.0
    %1799 = vmatpush1.msra.mxu0 0.0
    %1800 = vmatprep.subr.mxu0 0.0
    %1801 = vmatpush1.msra.mxu0 0.0
    %1802 = vmatprep.subr.mxu0 0.0
    %1803 = vmatpush1.msra.mxu0 0.0
    %1804 = vmatprep.subr.mxu0 0.0
    %1805 = vmatpush1.msra.mxu0 0.0
    %1806 = vmatprep.subr.mxu0 0.0
    %1807 = vmatpush1.msra.mxu0 0.0
    %1808 = vmatprep.subr.mxu0 0.0
    %1809 = vmatpush1.msra.mxu0 0.0
    %1810 = vmatprep.subr.mxu0 0.0
    %1811 = vmatpush1.msra.mxu0 0.0
    %1812 = vmatprep.subr.mxu0 0.0
    %1813 = vmatpush1.msra.mxu0 0.0
    %1814 = vmatprep.subr.mxu0 0.0
    %1815 = vmatpush1.msra.mxu0 0.0
    %1816 = vmatprep.subr.mxu0 0.0
    %1817 = vmatpush1.msra.mxu0 0.0
    %1818 = vmatprep.subr.mxu0 0.0
    %1819 = vmatpush1.msra.mxu0 0.0
    %1820 = vmatprep.subr.mxu0 0.0
    %1821 = vmatpush1.msra.mxu0 0.0
    %1822 = vmatprep.subr.mxu0 0.0
    %1823 = vmatpush1.msra.mxu0 0.0
    %1824 = vmatprep.subr.mxu0 0.0
    %1825 = vmatpush1.msra.mxu0 0.0
    %1826 = vmatprep.subr.mxu0 0.0
    %1827 = vmatpush1.msra.mxu0 0.0
    %1828 = vmatprep.mubr.f32.mxu0 0.0
    %1829 = vmatmul.mubr.f32.gmra.mrb[0].mxu0 %v1762
    %v1830 = vpop.f32.mrb[0].mxu0
    %v1831 = vadd.f32 0.0, %v1830
    %v1832 = vpop.f32.mrb[0].mxu0
    %1833 = vdwg.mxu0
    %v1835 = vsel %vm204, %v1307, 0
    %1837 = vmatprep.subr.mxu0 0.0
    %1838 = vmatpush1.msra.mxu0 %v1538
    %1839 = vmatprep.subr.mxu0 0.0
    %1840 = vmatpush1.msra.mxu0 0.0
    %1841 = vmatprep.subr.mxu0 0.0
    %1842 = vmatpush1.msra.mxu0 0.0
    %1843 = vmatprep.subr.mxu0 0.0
    %1844 = vmatpush1.msra.mxu0 0.0
    %1845 = vmatprep.subr.mxu0 0.0
    %1846 = vmatpush1.msra.mxu0 0.0
    %1847 = vmatprep.subr.mxu0 0.0
    %1848 = vmatpush1.msra.mxu0 0.0
    %1849 = vmatprep.subr.mxu0 0.0
    %1850 = vmatpush1.msra.mxu0 0.0
    %1851 = vmatprep.subr.mxu0 0.0
    %1852 = vmatpush1.msra.mxu0 0.0
    %1853 = vmatprep.subr.mxu0 0.0
    %1854 = vmatpush1.msra.mxu0 0.0
    %1855 = vmatprep.subr.mxu0 0.0
    %1856 = vmatpush1.msra.mxu0 0.0
    %1857 = vmatprep.subr.mxu0 0.0
    %1858 = vmatpush1.msra.mxu0 0.0
    %1859 = vmatprep.subr.mxu0 0.0
    %1860 = vmatpush1.msra.mxu0 0.0
    %1861 = vmatprep.subr.mxu0 0.0
    %1862 = vmatpush1.msra.mxu0 0.0
    %1863 = vmatprep.subr.mxu0 0.0
    %1864 = vmatpush1.msra.mxu0 0.0
    %1865 = vmatprep.subr.mxu0 0.0
    %1866 = vmatpush1.msra.mxu0 0.0
    %1867 = vmatprep.subr.mxu0 0.0
    %1868 = vmatpush1.msra.mxu0 0.0
    %1869 = vmatprep.subr.mxu0 0.0
    %1870 = vmatpush1.msra.mxu0 0.0
    %1871 = vmatprep.subr.mxu0 0.0
    %1872 = vmatpush1.msra.mxu0 0.0
    %1873 = vmatprep.subr.mxu0 0.0
    %1874 = vmatpush1.msra.mxu0 0.0
    %1875 = vmatprep.subr.mxu0 0.0
    %1876 = vmatpush1.msra.mxu0 0.0
    %1877 = vmatprep.subr.mxu0 0.0
    %1878 = vmatpush1.msra.mxu0 0.0
    %1879 = vmatprep.subr.mxu0 0.0
    %1880 = vmatpush1.msra.mxu0 0.0
    %1881 = vmatprep.subr.mxu0 0.0
    %1882 = vmatpush1.msra.mxu0 0.0
    %1883 = vmatprep.subr.mxu0 0.0
    %1884 = vmatpush1.msra.mxu0 0.0
    %1885 = vmatprep.subr.mxu0 0.0
    %1886 = vmatpush1.msra.mxu0 0.0
    %1887 = vmatprep.subr.mxu0 0.0
    %1888 = vmatpush1.msra.mxu0 0.0
    %1889 = vmatprep.subr.mxu0 0.0
    %1890 = vmatpush1.msra.mxu0 0.0
    %1891 = vmatprep.subr.mxu0 0.0
    %1892 = vmatpush1.msra.mxu0 0.0
    %1893 = vmatprep.subr.mxu0 0.0
    %1894 = vmatpush1.msra.mxu0 0.0
    %1895 = vmatprep.subr.mxu0 0.0
    %1896 = vmatpush1.msra.mxu0 0.0
    %1897 = vmatprep.subr.mxu0 0.0
    %1898 = vmatpush1.msra.mxu0 0.0
    %1899 = vmatprep.subr.mxu0 0.0
    %1900 = vmatpush1.msra.mxu0 0.0
    %1901 = vmatprep.mubr.f32.mxu0 0.0
    %1902 = vmatmul.mubr.f32.gmra.mrb[0].mxu0 %v1835
    %v1903 = vpop.f32.mrb[0].mxu0
    %v1904 = vadd.f32 0.0, %v1903
    %v1905 = vpop.f32.mrb[0].mxu0
    %1906 = vdwg.mxu0
    %v1908 = vsel %vm204, %v1383, 0
    %1910 = vmatprep.subr.mxu0 0.0
    %1911 = vmatpush1.msra.mxu0 %v1539
    %1912 = vmatprep.subr.mxu0 0.0
    %1913 = vmatpush1.msra.mxu0 0.0
    %1914 = vmatprep.subr.mxu0 0.0
    %1915 = vmatpush1.msra.mxu0 0.0
    %1916 = vmatprep.subr.mxu0 0.0
    %1917 = vmatpush1.msra.mxu0 0.0
    %1918 = vmatprep.subr.mxu0 0.0
    %1919 = vmatpush1.msra.mxu0 0.0
    %1920 = vmatprep.subr.mxu0 0.0
    %1921 = vmatpush1.msra.mxu0 0.0
    %1922 = vmatprep.subr.mxu0 0.0
    %1923 = vmatpush1.msra.mxu0 0.0
    %1924 = vmatprep.subr.mxu0 0.0
    %1925 = vmatpush1.msra.mxu0 0.0
    %1926 = vmatprep.subr.mxu0 0.0
    %1927 = vmatpush1.msra.mxu0 0.0
    %1928 = vmatprep.subr.mxu0 0.0
    %1929 = vmatpush1.msra.mxu0 0.0
    %1930 = vmatprep.subr.mxu0 0.0
    %1931 = vmatpush1.msra.mxu0 0.0
    %1932 = vmatprep.subr.mxu0 0.0
    %1933 = vmatpush1.msra.mxu0 0.0
    %1934 = vmatprep.subr.mxu0 0.0
    %1935 = vmatpush1.msra.mxu0 0.0
    %1936 = vmatprep.subr.mxu0 0.0
    %1937 = vmatpush1.msra.mxu0 0.0
    %1938 = vmatprep.subr.mxu0 0.0
    %1939 = vmatpush1.msra.mxu0 0.0
    %1940 = vmatprep.subr.mxu0 0.0
    %1941 = vmatpush1.msra.mxu0 0.0
    %1942 = vmatprep.subr.mxu0 0.0
    %1943 = vmatpush1.msra.mxu0 0.0
    %1944 = vmatprep.subr.mxu0 0.0
    %1945 = vmatpush1.msra.mxu0 0.0
    %1946 = vmatprep.subr.mxu0 0.0
    %1947 = vmatpush1.msra.mxu0 0.0
    %1948 = vmatprep.subr.mxu0 0.0
    %1949 = vmatpush1.msra.mxu0 0.0
    %1950 = vmatprep.subr.mxu0 0.0
    %1951 = vmatpush1.msra.mxu0 0.0
    %1952 = vmatprep.subr.mxu0 0.0
    %1953 = vmatpush1.msra.mxu0 0.0
    %1954 = vmatprep.subr.mxu0 0.0
    %1955 = vmatpush1.msra.mxu0 0.0
    %1956 = vmatprep.subr.mxu0 0.0
    %1957 = vmatpush1.msra.mxu0 0.0
    %1958 = vmatprep.subr.mxu0 0.0
    %1959 = vmatpush1.msra.mxu0 0.0
    %1960 = vmatprep.subr.mxu0 0.0
    %1961 = vmatpush1.msra.mxu0 0.0
    %1962 = vmatprep.subr.mxu0 0.0
    %1963 = vmatpush1.msra.mxu0 0.0
    %1964 = vmatprep.subr.mxu0 0.0
    %1965 = vmatpush1.msra.mxu0 0.0
    %1966 = vmatprep.subr.mxu0 0.0
    %1967 = vmatpush1.msra.mxu0 0.0
    %1968 = vmatprep.subr.mxu0 0.0
    %1969 = vmatpush1.msra.mxu0 0.0
    %1970 = vmatprep.subr.mxu0 0.0
    %1971 = vmatpush1.msra.mxu0 0.0
    %1972 = vmatprep.subr.mxu0 0.0
    %1973 = vmatpush1.msra.mxu0 0.0
    %1974 = vmatprep.mubr.f32.mxu0 0.0
    %1975 = vmatmul.mubr.f32.gmra.mrb[0].mxu0 %v1908
    %v1976 = vpop.f32.mrb[0].mxu0
    %v1977 = vadd.f32 0.0, %v1976
    %v1978 = vpop.f32.mrb[0].mxu0
    %1979 = vdwg.mxu0
    %v1981 = vsel %vm204, %v1459, 0
    %1983 = vmatprep.subr.mxu0 0.0
    %1984 = vmatpush1.msra.mxu0 %v1540
    %1985 = vmatprep.subr.mxu0 0.0
    %1986 = vmatpush1.msra.mxu0 0.0
    %1987 = vmatprep.subr.mxu0 0.0
    %1988 = vmatpush1.msra.mxu0 0.0
    %1989 = vmatprep.subr.mxu0 0.0
    %1990 = vmatpush1.msra.mxu0 0.0
    %1991 = vmatprep.subr.mxu0 0.0
    %1992 = vmatpush1.msra.mxu0 0.0
    %1993 = vmatprep.subr.mxu0 0.0
    %1994 = vmatpush1.msra.mxu0 0.0
    %1995 = vmatprep.subr.mxu0 0.0
    %1996 = vmatpush1.msra.mxu0 0.0
    %1997 = vmatprep.subr.mxu0 0.0
    %1998 = vmatpush1.msra.mxu0 0.0
    %1999 = vmatprep.subr.mxu0 0.0
    %2000 = vmatpush1.msra.mxu0 0.0
    %2001 = vmatprep.subr.mxu0 0.0
    %2002 = vmatpush1.msra.mxu0 0.0
    %2003 = vmatprep.subr.mxu0 0.0
    %2004 = vmatpush1.msra.mxu0 0.0
    %2005 = vmatprep.subr.mxu0 0.0
    %2006 = vmatpush1.msra.mxu0 0.0
    %2007 = vmatprep.subr.mxu0 0.0
    %2008 = vmatpush1.msra.mxu0 0.0
    %2009 = vmatprep.subr.mxu0 0.0
    %2010 = vmatpush1.msra.mxu0 0.0
    %2011 = vmatprep.subr.mxu0 0.0
    %2012 = vmatpush1.msra.mxu0 0.0
    %2013 = vmatprep.subr.mxu0 0.0
    %2014 = vmatpush1.msra.mxu0 0.0
    %2015 = vmatprep.subr.mxu0 0.0
    %2016 = vmatpush1.msra.mxu0 0.0
    %2017 = vmatprep.subr.mxu0 0.0
    %2018 = vmatpush1.msra.mxu0 0.0
    %2019 = vmatprep.subr.mxu0 0.0
    %2020 = vmatpush1.msra.mxu0 0.0
    %2021 = vmatprep.subr.mxu0 0.0
    %2022 = vmatpush1.msra.mxu0 0.0
    %2023 = vmatprep.subr.mxu0 0.0
    %2024 = vmatpush1.msra.mxu0 0.0
    %2025 = vmatprep.subr.mxu0 0.0
    %2026 = vmatpush1.msra.mxu0 0.0
    %2027 = vmatprep.subr.mxu0 0.0
    %2028 = vmatpush1.msra.mxu0 0.0
    %2029 = vmatprep.subr.mxu0 0.0
    %2030 = vmatpush1.msra.mxu0 0.0
    %2031 = vmatprep.subr.mxu0 0.0
    %2032 = vmatpush1.msra.mxu0 0.0
    %2033 = vmatprep.subr.mxu0 0.0
    %2034 = vmatpush1.msra.mxu0 0.0
    %2035 = vmatprep.subr.mxu0 0.0
    %2036 = vmatpush1.msra.mxu0 0.0
    %2037 = vmatprep.subr.mxu0 0.0
    %2038 = vmatpush1.msra.mxu0 0.0
    %2039 = vmatprep.subr.mxu0 0.0
    %2040 = vmatpush1.msra.mxu0 0.0
    %2041 = vmatprep.subr.mxu0 0.0
    %2042 = vmatpush1.msra.mxu0 0.0
    %2043 = vmatprep.subr.mxu0 0.0
    %2044 = vmatpush1.msra.mxu0 0.0
    %2045 = vmatprep.subr.mxu0 0.0
    %2046 = vmatpush1.msra.mxu0 0.0
    %2047 = vmatprep.mubr.f32.mxu0 0.0
    %2048 = vmatmul.mubr.f32.gmra.mrb[0].mxu0 %v1981
    %v2049 = vpop.f32.mrb[0].mxu0
    %v2050 = vadd.f32 0.0, %v2049
    %v2051 = vpop.f32.mrb[0].mxu0
    %2052 = vdwg.mxu0
    %v2054 = vsel %vm204, %v1535, 0
    %2056 = vmatprep.subr.mxu0 0.0
    %2057 = vmatpush1.msra.mxu0 %v1541
    %2058 = vmatprep.subr.mxu0 0.0
    %2059 = vmatpush1.msra.mxu0 0.0
    %2060 = vmatprep.subr.mxu0 0.0
    %2061 = vmatpush1.msra.mxu0 0.0
    %2062 = vmatprep.subr.mxu0 0.0
    %2063 = vmatpush1.msra.mxu0 0.0
    %2064 = vmatprep.subr.mxu0 0.0
    %2065 = vmatpush1.msra.mxu0 0.0
    %2066 = vmatprep.subr.mxu0 0.0
    %2067 = vmatpush1.msra.mxu0 0.0
    %2068 = vmatprep.subr.mxu0 0.0
    %2069 = vmatpush1.msra.mxu0 0.0
    %2070 = vmatprep.subr.mxu0 0.0
    %2071 = vmatpush1.msra.mxu0 0.0
    %2072 = vmatprep.subr.mxu0 0.0
    %2073 = vmatpush1.msra.mxu0 0.0
    %2074 = vmatprep.subr.mxu0 0.0
    %2075 = vmatpush1.msra.mxu0 0.0
    %2076 = vmatprep.subr.mxu0 0.0
    %2077 = vmatpush1.msra.mxu0 0.0
    %2078 = vmatprep.subr.mxu0 0.0
    %2079 = vmatpush1.msra.mxu0 0.0
    %2080 = vmatprep.subr.mxu0 0.0
    %2081 = vmatpush1.msra.mxu0 0.0
    %2082 = vmatprep.subr.mxu0 0.0
    %2083 = vmatpush1.msra.mxu0 0.0
    %2084 = vmatprep.subr.mxu0 0.0
    %2085 = vmatpush1.msra.mxu0 0.0
    %2086 = vmatprep.subr.mxu0 0.0
    %2087 = vmatpush1.msra.mxu0 0.0
    %2088 = vmatprep.subr.mxu0 0.0
    %2089 = vmatpush1.msra.mxu0 0.0
    %2090 = vmatprep.subr.mxu0 0.0
    %2091 = vmatpush1.msra.mxu0 0.0
    %2092 = vmatprep.subr.mxu0 0.0
    %2093 = vmatpush1.msra.mxu0 0.0
    %2094 = vmatprep.subr.mxu0 0.0
    %2095 = vmatpush1.msra.mxu0 0.0
    %2096 = vmatprep.subr.mxu0 0.0
    %2097 = vmatpush1.msra.mxu0 0.0
    %2098 = vmatprep.subr.mxu0 0.0
    %2099 = vmatpush1.msra.mxu0 0.0
    %2100 = vmatprep.subr.mxu0 0.0
    %2101 = vmatpush1.msra.mxu0 0.0
    %2102 = vmatprep.subr.mxu0 0.0
    %2103 = vmatpush1.msra.mxu0 0.0
    %2104 = vmatprep.subr.mxu0 0.0
    %2105 = vmatpush1.msra.mxu0 0.0
    %2106 = vmatprep.subr.mxu0 0.0
    %2107 = vmatpush1.msra.mxu0 0.0
    %2108 = vmatprep.subr.mxu0 0.0
    %2109 = vmatpush1.msra.mxu0 0.0
    %2110 = vmatprep.subr.mxu0 0.0
    %2111 = vmatpush1.msra.mxu0 0.0
    %2112 = vmatprep.subr.mxu0 0.0
    %2113 = vmatpush1.msra.mxu0 0.0
    %2114 = vmatprep.subr.mxu0 0.0
    %2115 = vmatpush1.msra.mxu0 0.0
    %2116 = vmatprep.subr.mxu0 0.0
    %2117 = vmatpush1.msra.mxu0 0.0
    %2118 = vmatprep.subr.mxu0 0.0
    %2119 = vmatpush1.msra.mxu0 0.0
    %2120 = vmatprep.mubr.f32.mxu0 0.0
    %2121 = vmatmul.mubr.f32.gmra.mrb[0].mxu0 %v2054
    %v2122 = vpop.f32.mrb[0].mxu0
    %v2123 = vadd.f32 0.0, %v2122
    %v2124 = vpop.f32.mrb[0].mxu0
    %2125 = vdwg.mxu0
    %v2126 = vadd.f32 %v1612, %v1685
    %v2127 = vadd.f32 %v2126, %v1758
    %v2128 = vadd.f32 %v2127, %v1831
    %v2129 = vadd.f32 %v1904, %v1977
    %v2130 = vadd.f32 %v2129, %v2050
    %v2131 = vadd.f32 %v2130, %v2123
    %v2132 = vld [vmem:[%s6] sm:$0x1]
    %v2134 = vlaneseq
    %v2135 = vshrl.u32 %v2134, 7
    %v2136 = vsub.s32 0, %v2135
    %v2137 = vrot.slane %v2132, %v2136
    %v2139 = vadd.f32 %v2128, %v2137
    %v2140 = vadd.f32 %v2131, %v2137
    %v2141 = vadd.f32 %v48, %v2139
    %v2142 = vadd.f32 %v49, %v2140
    %v2143 = vld [vmem:[%s7] sm:$0x1]
    %v2144 = vld [vmem:[%s8] sm:$0x1]
    %v2145 = vsel %vm52, %v2141, 0.0
    %2146 = vadd.xlane.f32.xlu0 %v2145
    %v2147 = vpop.xlane.xlu0 %2146
    %v2148 = vsel %vm52, %v2142, 0.0
    %2149 = vadd.xlane.f32.xlu0 %v2148
    %v2150 = vpop.xlane.xlu0 %2149
    %v2151 = vmul.f32 %v2147, %v59
    %v2152 = vmul.f32 %v2150, %v59
    %v2153 = vsub.f32 %v2141, %v2151
    %v2154 = vsub.f32 %v2142, %v2152
    %v2155 = vmul.f32 %v2153, %v2153
    %v2156 = vmul.f32 %v2154, %v2154
    %v2157 = vsel %vm52, %v2155, 0.0
    %2158 = vadd.xlane.f32.xlu0 %v2157
    %v2159 = vpop.xlane.xlu0 %2158
    %v2160 = vsel %vm52, %v2156, 0.0
    %2161 = vadd.xlane.f32.xlu0 %v2160
    %v2162 = vpop.xlane.xlu0 %2161
    %v2163 = vmul.f32 %v2159, %v59
    %v2164 = vmul.f32 %v2162, %v59
    %v2165 = vadd.f32 %v2163, 1e-05
    %v2166 = vadd.f32 %v2164, 1e-05
    %v2167 = vrsqrt.pop %v2165
    %v2168 = vrsqrt.pop %v2166
    %v2169 = vmul.f32 %v2153, %v2167
    %v2170 = vmul.f32 %v2154, %v2168
    %v2172 = vlaneseq
    %v2173 = vshrl.u32 %v2172, 7
    %v2174 = vsub.s32 0, %v2173
    %v2175 = vrot.slane %v2143, %v2174
    %v2177 = vmul.f32 %v2169, %v2175
    %v2178 = vmul.f32 %v2170, %v2175
    %v2180 = vlaneseq
    %v2181 = vshrl.u32 %v2180, 7
    %v2182 = vsub.s32 0, %v2181
    %v2183 = vrot.slane %v2144, %v2182
    %v2185 = vadd.f32 %v2177, %v2183
    %v2186 = vadd.f32 %v2178, %v2183
    %v2187 = vld [vmem:[%s9] sm:$0xff]
    %v2188 = vld [vmem:[%s9 + $0x8] sm:$0xff]
    %v2189 = vld [vmem:[%s9 + $0x10] sm:$0xff]
    %v2190 = vld [vmem:[%s9 + $0x18] sm:$0xff]
    %v2191 = vld [vmem:[%s10] sm:$0x1]
    %v2193 = vlaneseq
    %v2194 = vshrl.u32 %v2193, 7
    %v2195 = vsub.s32 0, %v2194
    %v2196 = vrot.slane %v2191, %v2195
    %v2199 = vsel %vm52, %v2185, 0
    %v2202 = vsel %vm52, %v2186, 0
    %2204 = vmatprep.subr.mxu0 0.0
    %2205 = vmatpush1.msra.mxu0 %v2187
    %2206 = vmatprep.subr.mxu0 0.0
    %2207 = vmatpush1.msra.mxu0 %v2188
    %2208 = vmatprep.subr.mxu0 0.0
    %2209 = vmatpush1.msra.mxu0 %v2189
    %2210 = vmatprep.subr.mxu0 0.0
    %2211 = vmatpush1.msra.mxu0 %v2190
    %2212 = vmatprep.subr.mxu0 0.0
    %2213 = vmatpush1.msra.mxu0 0.0
    %2214 = vmatprep.subr.mxu0 0.0
    %2215 = vmatpush1.msra.mxu0 0.0
    %2216 = vmatprep.subr.mxu0 0.0
    %2217 = vmatpush1.msra.mxu0 0.0
    %2218 = vmatprep.subr.mxu0 0.0
    %2219 = vmatpush1.msra.mxu0 0.0
    %2220 = vmatprep.subr.mxu0 0.0
    %2221 = vmatpush1.msra.mxu0 0.0
    %2222 = vmatprep.subr.mxu0 0.0
    %2223 = vmatpush1.msra.mxu0 0.0
    %2224 = vmatprep.subr.mxu0 0.0
    %2225 = vmatpush1.msra.mxu0 0.0
    %2226 = vmatprep.subr.mxu0 0.0
    %2227 = vmatpush1.msra.mxu0 0.0
    %2228 = vmatprep.subr.mxu0 0.0
    %2229 = vmatpush1.msra.mxu0 0.0
    %2230 = vmatprep.subr.mxu0 0.0
    %2231 = vmatpush1.msra.mxu0 0.0
    %2232 = vmatprep.subr.mxu0 0.0
    %2233 = vmatpush1.msra.mxu0 0.0
    %2234 = vmatprep.subr.mxu0 0.0
    %2235 = vmatpush1.msra.mxu0 0.0
    %2236 = vmatprep.subr.mxu0 0.0
    %2237 = vmatpush1.msra.mxu0 0.0
    %2238 = vmatprep.subr.mxu0 0.0
    %2239 = vmatpush1.msra.mxu0 0.0
    %2240 = vmatprep.subr.mxu0 0.0
    %2241 = vmatpush1.msra.mxu0 0.0
    %2242 = vmatprep.subr.mxu0 0.0
    %2243 = vmatpush1.msra.mxu0 0.0
    %2244 = vmatprep.subr.mxu0 0.0
    %2245 = vmatpush1.msra.mxu0 0.0
    %2246 = vmatprep.subr.mxu0 0.0
    %2247 = vmatpush1.msra.mxu0 0.0
    %2248 = vmatprep.subr.mxu0 0.0
    %2249 = vmatpush1.msra.mxu0 0.0
    %2250 = vmatprep.subr.mxu0 0.0
    %2251 = vmatpush1.msra.mxu0 0.0
    %2252 = vmatprep.subr.mxu0 0.0
    %2253 = vmatpush1.msra.mxu0 0.0
    %2254 = vmatprep.subr.mxu0 0.0
    %2255 = vmatpush1.msra.mxu0 0.0
    %2256 = vmatprep.subr.mxu0 0.0
    %2257 = vmatpush1.msra.mxu0 0.0
    %2258 = vmatprep.subr.mxu0 0.0
    %2259 = vmatpush1.msra.mxu0 0.0
    %2260 = vmatprep.subr.mxu0 0.0
    %2261 = vmatpush1.msra.mxu0 0.0
    %2262 = vmatprep.subr.mxu0 0.0
    %2263 = vmatpush1.msra.mxu0 0.0
    %2264 = vmatprep.subr.mxu0 0.0
    %2265 = vmatpush1.msra.mxu0 0.0
    %2266 = vmatprep.subr.mxu0 0.0
    %2267 = vmatpush1.msra.mxu0 0.0
    %2268 = vmatprep.mubr.f32.mxu0 0.0
    %2269 = vmatmul.mubr.f32.gmra.mrb[0].mxu0 %v2199
    %v2270 = vpop.f32.mrb[0].mxu0
    %v2271 = vadd.f32 %v2196, %v2270
    %v2272 = vpop.f32.mrb[0].mxu0
    %2273 = vmatprep.mubr.f32.mxu0 0.0
    %2274 = vmatmul.mubr.f32.gmra.mrb[0].mxu0 %v2202
    %v2275 = vpop.f32.mrb[0].mxu0
    %v2276 = vadd.f32 %v2196, %v2275
    %v2277 = vpop.f32.mrb[0].mxu0
    %2278 = vdwg.mxu0
    %v2279 = vmax.f32 %v2271, 0.0
    %v2280 = vmax.f32 %v2276, 0.0
    %v2281 = vld [vmem:[%s11] sm:$0xff]
    %v2282 = vld [vmem:[%s11 + $0x8] sm:$0xff]
    %v2283 = vld [vmem:[%s11 + $0x10] sm:$0xff]
    %v2284 = vld [vmem:[%s11 + $0x18] sm:$0xff]
    %v2285 = vld [vmem:[%s11 + $0x20] sm:$0xff]
    %v2286 = vld [vmem:[%s11 + $0x28] sm:$0xff]
    %v2287 = vld [vmem:[%s11 + $0x30] sm:$0xff]
    %v2288 = vld [vmem:[%s11 + $0x38] sm:$0xff]
    %v2289 = vld [vmem:[%s11 + $0x40] sm:$0xff]
    %v2290 = vld [vmem:[%s11 + $0x48] sm:$0xff]
    %v2291 = vld [vmem:[%s11 + $0x50] sm:$0xff]
    %v2292 = vld [vmem:[%s11 + $0x58] sm:$0xff]
    %v2293 = vld [vmem:[%s11 + $0x60] sm:$0xff]
    %v2294 = vld [vmem:[%s11 + $0x68] sm:$0xff]
    %v2295 = vld [vmem:[%s11 + $0x70] sm:$0xff]
    %v2296 = vld [vmem:[%s11 + $0x78] sm:$0xff]
    %v2297 = vld [vmem:[%s12] sm:$0x1]
    %v2299 = vlaneseq
    %v2300 = vshrl.u32 %v2299, 7
    %v2301 = vsub.s32 0, %v2300
    %v2302 = vrot.slane %v2297, %v2301
    %2304 = vmatprep.subr.mxu0 0.0
    %2305 = vmatpush1.msra.mxu0 %v2281
    %2306 = vmatprep.subr.mxu0 0.0
    %2307 = vmatpush1.msra.mxu0 %v2282
    %2308 = vmatprep.subr.mxu0 0.0
    %2309 = vmatpush1.msra.mxu0 %v2283
    %2310 = vmatprep.subr.mxu0 0.0
    %2311 = vmatpush1.msra.mxu0 %v2284
    %2312 = vmatprep.subr.mxu0 0.0
    %2313 = vmatpush1.msra.mxu0 %v2285
    %2314 = vmatprep.subr.mxu0 0.0
    %2315 = vmatpush1.msra.mxu0 %v2286
    %2316 = vmatprep.subr.mxu0 0.0
    %2317 = vmatpush1.msra.mxu0 %v2287
    %2318 = vmatprep.subr.mxu0 0.0
    %2319 = vmatpush1.msra.mxu0 %v2288
    %2320 = vmatprep.subr.mxu0 0.0
    %2321 = vmatpush1.msra.mxu0 %v2289
    %2322 = vmatprep.subr.mxu0 0.0
    %2323 = vmatpush1.msra.mxu0 %v2290
    %2324 = vmatprep.subr.mxu0 0.0
    %2325 = vmatpush1.msra.mxu0 %v2291
    %2326 = vmatprep.subr.mxu0 0.0
    %2327 = vmatpush1.msra.mxu0 %v2292
    %2328 = vmatprep.subr.mxu0 0.0
    %2329 = vmatpush1.msra.mxu0 %v2293
    %2330 = vmatprep.subr.mxu0 0.0
    %2331 = vmatpush1.msra.mxu0 %v2294
    %2332 = vmatprep.subr.mxu0 0.0
    %2333 = vmatpush1.msra.mxu0 %v2295
    %2334 = vmatprep.subr.mxu0 0.0
    %2335 = vmatpush1.msra.mxu0 %v2296
    %2336 = vmatprep.subr.mxu0 0.0
    %2337 = vmatpush1.msra.mxu0 0.0
    %2338 = vmatprep.subr.mxu0 0.0
    %2339 = vmatpush1.msra.mxu0 0.0
    %2340 = vmatprep.subr.mxu0 0.0
    %2341 = vmatpush1.msra.mxu0 0.0
    %2342 = vmatprep.subr.mxu0 0.0
    %2343 = vmatpush1.msra.mxu0 0.0
    %2344 = vmatprep.subr.mxu0 0.0
    %2345 = vmatpush1.msra.mxu0 0.0
    %2346 = vmatprep.subr.mxu0 0.0
    %2347 = vmatpush1.msra.mxu0 0.0
    %2348 = vmatprep.subr.mxu0 0.0
    %2349 = vmatpush1.msra.mxu0 0.0
    %2350 = vmatprep.subr.mxu0 0.0
    %2351 = vmatpush1.msra.mxu0 0.0
    %2352 = vmatprep.subr.mxu0 0.0
    %2353 = vmatpush1.msra.mxu0 0.0
    %2354 = vmatprep.subr.mxu0 0.0
    %2355 = vmatpush1.msra.mxu0 0.0
    %2356 = vmatprep.subr.mxu0 0.0
    %2357 = vmatpush1.msra.mxu0 0.0
    %2358 = vmatprep.subr.mxu0 0.0
    %2359 = vmatpush1.msra.mxu0 0.0
    %2360 = vmatprep.subr.mxu0 0.0
    %2361 = vmatpush1.msra.mxu0 0.0
    %2362 = vmatprep.subr.mxu0 0.0
    %2363 = vmatpush1.msra.mxu0 0.0
    %2364 = vmatprep.subr.mxu0 0.0
    %2365 = vmatpush1.msra.mxu0 0.0
    %2366 = vmatprep.subr.mxu0 0.0
    %2367 = vmatpush1.msra.mxu0 0.0
    %2368 = vmatprep.mubr.f32.mxu0 0.0
    %2369 = vmatmul.mubr.f32.gmra.mrb[0].mxu0 %v2279
    %v2370 = vpop.f32.mrb[0].mxu0
    %v2371 = vadd.f32 %v2302, %v2370
    %v2372 = vpop.f32.mrb[0].mxu0
    %2373 = vmatprep.mubr.f32.mxu0 0.0
    %2374 = vmatmul.mubr.f32.gmra.mrb[0].mxu0 %v2280
    %v2375 = vpop.f32.mrb[0].mxu0
    %v2376 = vadd.f32 %v2302, %v2375
    %v2377 = vpop.f32.mrb[0].mxu0
    %2378 = vdwg.mxu0
    %v2379 = vadd.f32 %v2141, %v2371
    %v2380 = vadd.f32 %v2142, %v2376
    %2381 = vst.msk [vmem:[#allocation2] sm:$0xff] %vm52, %v2379
    %2382 = vst.msk [vmem:[#allocation2 + $0x8] sm:$0xff] %vm52, %v2380
    // Predicated region
    $region54: #{tpu_custom_call.1} parent=1 // pred_check
      _
    $region55: #{tpu_custom_call.1} parent=1 // pred_check_branch
      %2384 = sbr.rel (0) target = $region57
    $region56: #{tpu_custom_call.1} parent=1 // pred_region
      %s2386 = ssub.s32 256, 256
      %2387 = vsyncadd [#allocation3], %s2386
      %s2388 = sshll.u32 [#allocation2], 4
      %s2389 = int_to_ptr.vmem [resolvable:$true] %s2388
      %2394 = dma.vmem_to_hbm [thread:$0]  %s2389, 256, %s13, [#allocation3], 128, 128, 8
    $region57: #{tpu_custom_call.1} parent=1 // pred_fallthru
      _
    // Predicated region
    $region58: #{tpu_custom_call.1} parent=1 // pred_check
      _
    $region59: #{tpu_custom_call.1} parent=1 // pred_check_branch
      %2396 = sbr.rel (0) target = $region61
    $region60: #{tpu_custom_call.1} parent=1 // pred_region
      %s2398 = ssub.s32 1024, 1024
      %2399 = vsyncadd [#allocation5], %s2398
      %s2400 = sshll.u32 [#allocation4], 4
      %s2401 = int_to_ptr.vmem [resolvable:$true] %s2400
      %2406 = dma.vmem_to_hbm [thread:$0]  %s2401, 1024, %s14, [#allocation5], 128, 128, 8
    $region61: #{tpu_custom_call.1} parent=1 // pred_fallthru
      _
    // Predicated region
    $region62: #{tpu_custom_call.1} parent=1 // pred_check
      _
    $region63: #{tpu_custom_call.1} parent=1 // pred_check_branch
      %2408 = sbr.rel (0) target = $region65
    $region64: #{tpu_custom_call.1} parent=1 // pred_region
      %2409 = dma.done [#allocation3], 256
    $region65: #{tpu_custom_call.1} parent=1 // pred_fallthru
      _
    // Predicated region
    $region66: #{tpu_custom_call.1} parent=1 // pred_check
      _
    $region67: #{tpu_custom_call.1} parent=1 // pred_check_branch
      %2411 = sbr.rel (0) target = $region69
    $region68: #{tpu_custom_call.1} parent=1 // pred_region
      %2412 = dma.done [#allocation5], 1024
    $region69: #{tpu_custom_call.1} parent=1 // pred_fallthru
      _
    %2413 = vsyncpa [#allocation3], 1
    %2414 = vsyncpa [#allocation5], 1

</llo_original>
